<compile_context>
chip_gen: v6e
topology: v6e:2x2x1
jax: 0.10.0
libtpu: 0.0.40
codegen_flags: <defaults>
</compile_context>

<pallas_src>
from functools import partial

import jax
import jax.numpy as jnp
import numpy as np
from jax import lax
from jax.experimental import pallas as pl
from jax.experimental.pallas import tpu as pltpu


def _round_up(x, m):
    return (x + m - 1) // m * m


def _vmem_budget_bytes():
    """Generation-aware scoped-VMEM budget: ~70% of physical, capped at 96 MiB.

    v5e/v6e (128 MiB physical) -> ~90 MiB;  v7x (64 MiB physical) -> ~45 MiB.
    """
    cap = 64 * 1024 * 1024
    try:
        cap = int(getattr(pltpu.get_tpu_info(), "vmem_capacity_bytes", cap))
    except Exception:
        pass  # conservative default if the query is unavailable
    return max(16 * 1024 * 1024, min(int(cap * 0.7), 96 * 1024 * 1024))


def _max_rows_for_budget(*, E_pad, HD, H, seq, F, vmem_budget_bytes, mm_bytes):
    """Row budget for the batch tile so double-buffered slabs + intermediates fit the VMEM budget."""
    # Per-row bytes: 2x-buffered input + output slabs, qkv + head-split copies, scores/probs,
    # ffn hidden, residual temporaries (all f32 except where noted; conservative).
    per_row = 4 * (4 * E_pad + 6 * HD + 2 * H * seq + F + 4 * E_pad)
    # Resident, 2x-buffered weights/biases.
    weights = 2 * mm_bytes * (4 * E_pad * HD + 2 * E_pad * F) + 2 * 4 * (2 * E_pad + F)
    avail = vmem_budget_bytes - weights - (4 << 20)  # headroom for compiler scratch
    rows = max(seq, avail // max(per_row, 1))
    return int(min(rows, 4096))


def _pick_b_tile(batch, seq, max_rows):
    """Largest divisor of `batch` whose row-slab fits the budget, is sublane-aligned,
    and leaves >= 2 grid steps (so both v7x TensorCores are used)."""
    best = None
    for t in range(1, batch + 1):
        if batch % t:
            continue
        rows = t * seq
        if rows > max_rows:
            continue
        if rows % 8 and t != batch:
            continue                       # keep every block's sublane dim 8-aligned
        if batch >= 2 and batch // t < 2:
            continue                       # >= 2 grid steps -> both v7x cores get work
        best = t
    if best is None:                       # relax alignment / dual-core prefs, keep the budget
        for t in range(1, batch + 1):
            if batch % t == 0 and t * seq <= max_rows:
                best = t
    return best if best is not None else 1  # safe fallback: smallest tile


def encoder_layer_kernel(x_ref, wqkv_ref, wc_ref, bc_ref, w1_ref, b1_ref, w2_ref, b2_ref,
                         o_ref, *, b_tile, seq, head_num, qkv_dim):
    H, D = head_num, qkv_dim
    HD = H * D
    rows = b_tile * seq
    f32 = jnp.float32
    mm = wqkv_ref.dtype            # MXU operand dtype (bf16 by default); accumulation always f32

    x = x_ref[...].astype(f32)     # (rows, E_pad); residual path stays f32

    # Fused QKV projection: one wide plain A @ B matmul (weights pre-transposed in the wrapper).
    qkv = jnp.dot(x.astype(mm), wqkv_ref[...], preferred_element_type=f32)      # (rows, 3*HD)

    scale = qkv_dim ** -0.5
    q = qkv[:, 0 * HD:1 * HD] * scale       # fold softmax scale into q once
    k = qkv[:, 1 * HD:2 * HD]
    v = qkv[:, 2 * HD:3 * HD]

    def to_heads(t):
        # (rows, H*D) -> (H*b_tile, seq, D): one relayout per tensor, head-major batch dim.
        return t.reshape(rows, H, D).transpose(1, 0, 2).reshape(H * b_tile, seq, D)

    qh = to_heads(q).astype(mm)
    kh = to_heads(k).astype(mm)
    vh = to_heads(v).astype(mm)

    # Batched attention over (head*batch): one dot_general each for Q.K^T and P.V.
    s = lax.dot_general(qh, kh,
                        dimension_numbers=(((2,), (2,)), ((0,), (0,))),
                        preferred_element_type=f32)                             # (H*b, seq, seq)
    s = s - jnp.max(s, axis=-1, keepdims=True)                                  # stable softmax
    e = jnp.exp(s)
    p = e / jnp.sum(e, axis=-1, keepdims=True)                                  # exact divide (f32)

    oh = lax.dot_general(p.astype(mm), vh,
                         dimension_numbers=(((2,), (1,)), ((0,), (0,))),
                         preferred_element_type=f32)                            # (H*b, seq, D)

    # Merge heads back to lanes ONCE, then a single combine matmul with K = H*D.
    o_merged = oh.reshape(H, rows, D).transpose(1, 0, 2).reshape(rows, HD)
    mh = jnp.dot(o_merged.astype(mm), wc_ref[...], preferred_element_type=f32) + bc_ref[...]

    out1 = x + mh                           # residual in f32

    # Feed-forward: W2(relu(W1(out1))) -- plain A @ B matmuls against pre-transposed weights.
    h1 = jnp.maximum(
        jnp.dot(out1.astype(mm), w1_ref[...], preferred_element_type=f32) + b1_ref[...], 0.0)
    ff = jnp.dot(h1.astype(mm), w2_ref[...], preferred_element_type=f32) + b2_ref[...]

    o_ref[...] = (out1 + ff).astype(o_ref.dtype)


def encoder_layer(x, params, *, head_num, qkv_dim, matmul_dtype=jnp.bfloat16):
    B, N, E = x.shape
    HD = head_num * qkv_dim
    F = params["w1"].shape[0]
    f32 = jnp.float32
    mm_bytes = jnp.dtype(matmul_dtype).itemsize

    # Pad the embedding lane dim only when it is large AND misaligned; for E <= 128 (or E a
    # multiple of 128) the blocks use the full array dim -> no padded-output HBM round trip.
    E_pad = E if (E <= 128 or E % 128 == 0) else _round_up(E, 128)
    pad_e = E_pad - E

    # Pre-transposed weights so every kernel matmul contracts lhs dim -1 with rhs dim 0.
    wqkv = jnp.concatenate([params["wq"], params["wk"], params["wv"]], axis=0)          # (3HD, E)
    wqkv_t = jnp.pad(wqkv, ((0, 0), (0, pad_e))).T.astype(matmul_dtype)                 # (E_pad, 3HD)
    wc_t = jnp.pad(params["wc"], ((0, pad_e), (0, 0))).T.astype(matmul_dtype)           # (HD, E_pad)
    bc = jnp.pad(params["bc"], ((0, 0), (0, pad_e))).astype(f32)                        # (1, E_pad)
    w1_t = jnp.pad(params["w1"], ((0, 0), (0, pad_e))).T.astype(matmul_dtype)           # (E_pad, F)
    b1 = params["b1"].astype(f32)                                                       # (1, F)
    w2_t = jnp.pad(params["w2"], ((0, pad_e), (0, 0))).T.astype(matmul_dtype)           # (F, E_pad)
    b2 = jnp.pad(params["b2"], ((0, 0), (0, pad_e))).astype(f32)                        # (1, E_pad)

    # Flatten batch*seq into one sublane-dense row dimension (free XLA reshape).
    x_flat = jnp.pad(x.reshape(B * N, E).astype(f32), ((0, 0), (0, pad_e)))             # (B*N, E_pad)

    vmem_budget = _vmem_budget_bytes()
    max_rows = _max_rows_for_budget(E_pad=E_pad, HD=HD, H=head_num, seq=N, F=F,
                                    vmem_budget_bytes=vmem_budget, mm_bytes=mm_bytes)
    b_tile = _pick_b_tile(B, N, max_rows)
    rows = b_tile * N
    grid = (B // b_tile,)

    def full_spec(shape):
        zeros = (0,) * len(shape)
        return pl.BlockSpec(shape, lambda b, _z=zeros: _z)   # weight resident across the grid

    kernel = partial(encoder_layer_kernel, b_tile=b_tile, seq=N,
                     head_num=head_num, qkv_dim=qkv_dim)

    out_flat = pl.pallas_call(
        kernel,
        out_shape=jax.ShapeDtypeStruct((B * N, E_pad), x.dtype),
        grid=grid,
        in_specs=[
            pl.BlockSpec((rows, E_pad), lambda b: (b, 0)),   # activations, batch-tiled
            full_spec((E_pad, 3 * HD)),                      # fused Wqkv^T
            full_spec((HD, E_pad)),                          # Wc^T (multi_head_combine)
            full_spec((1, E_pad)),                           # bc
            full_spec((E_pad, F)),                           # W1^T
            full_spec((1, F)),                               # b1
            full_spec((F, E_pad)),                           # W2^T
            full_spec((1, E_pad)),                           # b2
        ],
        out_specs=pl.BlockSpec((rows, E_pad), lambda b: (b, 0)),
        compiler_params=pltpu.CompilerParams(
            dimension_semantics=("parallel",),
            vmem_limit_bytes=vmem_budget),
    )(x_flat, wqkv_t, wc_t, bc, w1_t, b1, w2_t, b2)

    out = out_flat.reshape(B, N, E_pad)
    if pad_e:
        out = out[..., :E]
    return out.astype(x.dtype)


def encoder_layer_ref(x, params, *, head_num, qkv_dim):
    """Pure-JAX reference mirroring the PyTorch forward."""
    B, N, E = x.shape
    q = x @ params["wq"].T
    k = x @ params["wk"].T
    v = x @ params["wv"].T

    def by_heads(t):  # (B, N, H*D) -> (B, H, N, D)
        return t.reshape(B, N, head_num, qkv_dim).transpose(0, 2, 1, 3)

    qh, kh, vh = by_heads(q), by_heads(k), by_heads(v)
    score = jnp.einsum("bhnd,bhmd->bhnm", qh, kh) / jnp.sqrt(jnp.float32(qkv_dim))
    w = jax.nn.softmax(score, axis=-1)
    out = jnp.einsum("bhnm,bhmd->bhnd", w, vh)                           # (B, H, N, D)
    out_concat = out.transpose(0, 2, 1, 3).reshape(B, N, head_num * qkv_dim)
    mh = out_concat @ params["wc"].T + params["bc"][0]
    out1 = x + mh
    ff = jnp.maximum(out1 @ params["w1"].T + params["b1"][0], 0.0) @ params["w2"].T + params["b2"][0]
    return out1 + ff


if __name__ == "__main__":
    # Small shapes consistent with the module's forward.
    batch, seq = 2, 8
    embedding_dim, head_num, qkv_dim, ff_hidden_dim = 32, 4, 8, 64
    HD = head_num * qkv_dim

    key = jax.random.PRNGKey(0)
    ks = jax.random.split(key, 10)

    x = jax.random.normal(ks[0], (batch, seq, embedding_dim), dtype=jnp.float32)

    params = {
        "wq": 0.1 * jax.random.normal(ks[1], (HD, embedding_dim), dtype=jnp.float32),
        "wk": 0.1 * jax.random.normal(ks[2], (HD, embedding_dim), dtype=jnp.float32),
        "wv": 0.1 * jax.random.normal(ks[3], (HD, embedding_dim), dtype=jnp.float32),
        "wc": 0.1 * jax.random.normal(ks[4], (embedding_dim, HD), dtype=jnp.float32),
        "bc": 0.1 * jax.random.normal(ks[5], (1, embedding_dim), dtype=jnp.float32),
        "w1": 0.1 * jax.random.normal(ks[6], (ff_hidden_dim, embedding_dim), dtype=jnp.float32),
        "b1": 0.1 * jax.random.normal(ks[7], (1, ff_hidden_dim), dtype=jnp.float32),
        "w2": 0.1 * jax.random.normal(ks[8], (embedding_dim, ff_hidden_dim), dtype=jnp.float32),
        "b2": 0.1 * jax.random.normal(ks[9], (1, embedding_dim), dtype=jnp.float32),
    }

    ref = encoder_layer_ref(x, params, head_num=head_num, qkv_dim=qkv_dim)

    # Exact path: f32 MXU operands.
    out_f32 = encoder_layer(x, params, head_num=head_num, qkv_dim=qkv_dim,
                            matmul_dtype=jnp.float32)
    out_f32 = jax.block_until_ready(out_f32)
    np.testing.assert_allclose(np.asarray(out_f32), np.asarray(ref), rtol=2e-3, atol=2e-3)

    # Default path: bf16 MXU operands (f32 accumulation; softmax/bias/residual in f32).
    out_bf16 = encoder_layer(x, params, head_num=head_num, qkv_dim=qkv_dim)
    out_bf16 = jax.block_until_ready(out_bf16)
    np.testing.assert_allclose(np.asarray(out_bf16), np.asarray(ref), rtol=5e-2, atol=5e-2)

    print("KERNEL_OK")
</pallas_src>

<mosaic_0001>
module attributes {stable_mosaic.version = 11 : i64} {
  func.func @encoder_layer_kernel(%arg0: i32, %arg1: memref<8x32xf32, #tpu.memory_space<vmem>>, %arg2: memref<32x96xf32, #tpu.memory_space<vmem>>, %arg3: memref<32x32xf32, #tpu.memory_space<vmem>>, %arg4: memref<1x32xf32, #tpu.memory_space<vmem>>, %arg5: memref<32x64xf32, #tpu.memory_space<vmem>>, %arg6: memref<1x64xf32, #tpu.memory_space<vmem>>, %arg7: memref<64x32xf32, #tpu.memory_space<vmem>>, %arg8: memref<1x32xf32, #tpu.memory_space<vmem>>, %arg9: memref<8x32xf32, #tpu.memory_space<vmem>>) attributes {dimension_semantics = [#tpu.dimension_semantics<parallel>], iteration_bounds = array<i64: 2>, scalar_prefetch = 0 : i64, scratch_operands = 0 : i64, tpu.core_type = #tpu.core_type<tc>, window_params = [{transform_indices = @transform_0, window_bounds = array<i64: 8, 32>}, {pipeline_mode = #tpu.pipeline_mode<synchronous>, transform_indices = @transform_1, window_bounds = array<i64: 32, 96>}, {pipeline_mode = #tpu.pipeline_mode<synchronous>, transform_indices = @transform_2, window_bounds = array<i64: 32, 32>}, {pipeline_mode = #tpu.pipeline_mode<synchronous>, transform_indices = @transform_3, window_bounds = array<i64: 1, 32>}, {pipeline_mode = #tpu.pipeline_mode<synchronous>, transform_indices = @transform_4, window_bounds = array<i64: 32, 64>}, {pipeline_mode = #tpu.pipeline_mode<synchronous>, transform_indices = @transform_5, window_bounds = array<i64: 1, 64>}, {pipeline_mode = #tpu.pipeline_mode<synchronous>, transform_indices = @transform_6, window_bounds = array<i64: 64, 32>}, {pipeline_mode = #tpu.pipeline_mode<synchronous>, transform_indices = @transform_7, window_bounds = array<i64: 1, 32>}, {transform_indices = @transform_8, window_bounds = array<i64: 8, 32>}]} {
    %c0 = arith.constant 0 : index
    %c0_0 = arith.constant 0 : index
    %0 = vector.load %arg1[%c0, %c0_0] : memref<8x32xf32, #tpu.memory_space<vmem>>, vector<8x32xf32>
    %c0_1 = arith.constant 0 : index
    %c0_2 = arith.constant 0 : index
    %1 = vector.load %arg2[%c0_1, %c0_2] : memref<32x96xf32, #tpu.memory_space<vmem>>, vector<32x96xf32>
    %cst = arith.constant dense<0.000000e+00> : vector<8x96xf32>
    %2 = tpu.matmul %0, %1, %cst {dimension_numbers = #tpu.dot_dimension_numbers<[1], [0], [0], [1], [0, 0, 1, 1], [], []>} : vector<8x32xf32>, vector<32x96xf32>, vector<8x96xf32> -> vector<8x96xf32>
    %3 = vector.extract_strided_slice %2 {offsets = [0, 0], sizes = [8, 32], strides = [1, 1]} : vector<8x96xf32> to vector<8x32xf32>
    %cst_3 = arith.constant 0.353553385 : f32
    %4 = vector.broadcast %cst_3 : f32 to vector<8x32xf32>
    %5 = arith.mulf %3, %4 : vector<8x32xf32>
    %6 = vector.extract_strided_slice %2 {offsets = [0, 32], sizes = [8, 32], strides = [1, 1]} : vector<8x96xf32> to vector<8x32xf32>
    %7 = vector.extract_strided_slice %2 {offsets = [0, 64], sizes = [8, 32], strides = [1, 1]} : vector<8x96xf32> to vector<8x32xf32>
    %8 = vector.shape_cast %5 : vector<8x32xf32> to vector<8x4x8xf32>
    %9 = tpu.transpose %8, [1, 0, 2] : vector<8x4x8xf32> -> vector<4x8x8xf32>
    %10 = vector.shape_cast %6 : vector<8x32xf32> to vector<8x4x8xf32>
    %11 = tpu.transpose %10, [1, 0, 2] : vector<8x4x8xf32> -> vector<4x8x8xf32>
    %12 = vector.shape_cast %7 : vector<8x32xf32> to vector<8x4x8xf32>
    %13 = tpu.transpose %12, [1, 0, 2] : vector<8x4x8xf32> -> vector<4x8x8xf32>
    %cst_4 = arith.constant dense<0.000000e+00> : vector<4x8x8xf32>
    %14 = tpu.matmul %9, %11, %cst_4 {dimension_numbers = #tpu.dot_dimension_numbers<[2], [2], [1], [1], [0, 0, 0, 1, 1, 1], [0], [0]>} : vector<4x8x8xf32>, vector<4x8x8xf32>, vector<4x8x8xf32> -> vector<4x8x8xf32>
    %cst_5 = arith.constant dense<0xFF800000> : vector<4x8xf32>
    %15 = vector.multi_reduction <maximumf>, %14, %cst_5 [2] : vector<4x8x8xf32> to vector<4x8xf32>
    %16 = vector.shape_cast %15 : vector<4x8xf32> to vector<4x8x1xf32>
    %17 = vector.broadcast %16 : vector<4x8x1xf32> to vector<4x8x8xf32>
    %18 = arith.subf %14, %17 : vector<4x8x8xf32>
    %19 = math.exp %18 : vector<4x8x8xf32>
    %cst_6 = arith.constant dense<0.000000e+00> : vector<4x8xf32>
    %20 = vector.multi_reduction <add>, %19, %cst_6 [2] : vector<4x8x8xf32> to vector<4x8xf32>
    %21 = vector.shape_cast %20 : vector<4x8xf32> to vector<4x8x1xf32>
    %22 = vector.broadcast %21 : vector<4x8x1xf32> to vector<4x8x8xf32>
    %23 = arith.divf %19, %22 : vector<4x8x8xf32>
    %cst_7 = arith.constant dense<0.000000e+00> : vector<4x8x8xf32>
    %24 = tpu.matmul %23, %13, %cst_7 {dimension_numbers = #tpu.dot_dimension_numbers<[2], [1], [1], [2], [0, 0, 0, 1, 1, 2], [0], [0]>} : vector<4x8x8xf32>, vector<4x8x8xf32>, vector<4x8x8xf32> -> vector<4x8x8xf32>
    %25 = tpu.transpose %24, [1, 0, 2] : vector<4x8x8xf32> -> vector<8x4x8xf32>
    %26 = vector.shape_cast %25 : vector<8x4x8xf32> to vector<8x32xf32>
    %c0_8 = arith.constant 0 : index
    %c0_9 = arith.constant 0 : index
    %27 = vector.load %arg3[%c0_8, %c0_9] : memref<32x32xf32, #tpu.memory_space<vmem>>, vector<32x32xf32>
    %cst_10 = arith.constant dense<0.000000e+00> : vector<8x32xf32>
    %28 = tpu.matmul %26, %27, %cst_10 {dimension_numbers = #tpu.dot_dimension_numbers<[1], [0], [0], [1], [0, 0, 1, 1], [], []>} : vector<8x32xf32>, vector<32x32xf32>, vector<8x32xf32> -> vector<8x32xf32>
    %c0_11 = arith.constant 0 : index
    %c0_12 = arith.constant 0 : index
    %29 = vector.load %arg4[%c0_11, %c0_12] : memref<1x32xf32, #tpu.memory_space<vmem>>, vector<1x32xf32>
    %30 = vector.broadcast %29 : vector<1x32xf32> to vector<8x32xf32>
    %31 = arith.addf %28, %30 : vector<8x32xf32>
    %32 = arith.addf %0, %31 : vector<8x32xf32>
    %c0_13 = arith.constant 0 : index
    %c0_14 = arith.constant 0 : index
    %33 = vector.load %arg5[%c0_13, %c0_14] : memref<32x64xf32, #tpu.memory_space<vmem>>, vector<32x64xf32>
    %cst_15 = arith.constant dense<0.000000e+00> : vector<8x64xf32>
    %34 = tpu.matmul %32, %33, %cst_15 {dimension_numbers = #tpu.dot_dimension_numbers<[1], [0], [0], [1], [0, 0, 1, 1], [], []>} : vector<8x32xf32>, vector<32x64xf32>, vector<8x64xf32> -> vector<8x64xf32>
    %c0_16 = arith.constant 0 : index
    %c0_17 = arith.constant 0 : index
    %35 = vector.load %arg6[%c0_16, %c0_17] : memref<1x64xf32, #tpu.memory_space<vmem>>, vector<1x64xf32>
    %36 = vector.broadcast %35 : vector<1x64xf32> to vector<8x64xf32>
    %37 = arith.addf %34, %36 : vector<8x64xf32>
    %cst_18 = arith.constant 0.000000e+00 : f32
    %38 = vector.broadcast %cst_18 : f32 to vector<8x64xf32>
    %39 = arith.maximumf %37, %38 : vector<8x64xf32>
    %c0_19 = arith.constant 0 : index
    %c0_20 = arith.constant 0 : index
    %40 = vector.load %arg7[%c0_19, %c0_20] : memref<64x32xf32, #tpu.memory_space<vmem>>, vector<64x32xf32>
    %cst_21 = arith.constant dense<0.000000e+00> : vector<8x32xf32>
    %41 = tpu.matmul %39, %40, %cst_21 {dimension_numbers = #tpu.dot_dimension_numbers<[1], [0], [0], [1], [0, 0, 1, 1], [], []>} : vector<8x64xf32>, vector<64x32xf32>, vector<8x32xf32> -> vector<8x32xf32>
    %c0_22 = arith.constant 0 : index
    %c0_23 = arith.constant 0 : index
    %42 = vector.load %arg8[%c0_22, %c0_23] : memref<1x32xf32, #tpu.memory_space<vmem>>, vector<1x32xf32>
    %43 = vector.broadcast %42 : vector<1x32xf32> to vector<8x32xf32>
    %44 = arith.addf %41, %43 : vector<8x32xf32>
    %45 = arith.addf %32, %44 : vector<8x32xf32>
    %c0_24 = arith.constant 0 : index
    %c0_25 = arith.constant 0 : index
    %46 = vector.load %arg9[%c0_24, %c0_25] : memref<8x32xf32, #tpu.memory_space<vmem>>, vector<8x32xf32>
    tpu.vector_store %arg9[%c0_24, %c0_25], %45 {strides = array<i32>} : memref<8x32xf32, #tpu.memory_space<vmem>>, vector<8x32xf32>,
    return
  }
  func.func @transform_0(%arg0: i32) -> (i32, i32) {
    %c0_i32 = arith.constant 0 : i32
    %c0_i32_0 = arith.constant 0 : i32
    return %arg0, %c0_i32 : i32, i32
  }
  func.func @transform_1(%arg0: i32) -> (i32, i32) {
    %c0_i32 = arith.constant 0 : i32
    %c0_i32_0 = arith.constant 0 : i32
    %c0_i32_1 = arith.constant 0 : i32
    return %c0_i32, %c0_i32_0 : i32, i32
  }
  func.func @transform_2(%arg0: i32) -> (i32, i32) {
    %c0_i32 = arith.constant 0 : i32
    %c0_i32_0 = arith.constant 0 : i32
    %c0_i32_1 = arith.constant 0 : i32
    return %c0_i32, %c0_i32_0 : i32, i32
  }
  func.func @transform_3(%arg0: i32) -> (i32, i32) {
    %c0_i32 = arith.constant 0 : i32
    %c0_i32_0 = arith.constant 0 : i32
    %c0_i32_1 = arith.constant 0 : i32
    return %c0_i32, %c0_i32_0 : i32, i32
  }
  func.func @transform_4(%arg0: i32) -> (i32, i32) {
    %c0_i32 = arith.constant 0 : i32
    %c0_i32_0 = arith.constant 0 : i32
    %c0_i32_1 = arith.constant 0 : i32
    return %c0_i32, %c0_i32_0 : i32, i32
  }
  func.func @transform_5(%arg0: i32) -> (i32, i32) {
    %c0_i32 = arith.constant 0 : i32
    %c0_i32_0 = arith.constant 0 : i32
    %c0_i32_1 = arith.constant 0 : i32
    return %c0_i32, %c0_i32_0 : i32, i32
  }
  func.func @transform_6(%arg0: i32) -> (i32, i32) {
    %c0_i32 = arith.constant 0 : i32
    %c0_i32_0 = arith.constant 0 : i32
    %c0_i32_1 = arith.constant 0 : i32
    return %c0_i32, %c0_i32_0 : i32, i32
  }
  func.func @transform_7(%arg0: i32) -> (i32, i32) {
    %c0_i32 = arith.constant 0 : i32
    %c0_i32_0 = arith.constant 0 : i32
    %c0_i32_1 = arith.constant 0 : i32
    return %c0_i32, %c0_i32_0 : i32, i32
  }
  func.func @transform_8(%arg0: i32) -> (i32, i32) {
    %c0_i32 = arith.constant 0 : i32
    %c0_i32_0 = arith.constant 0 : i32
    return %arg0, %c0_i32 : i32, i32
  }
}

</mosaic_0001>

<llo_original>
// kernel: tpu_custom_call.1
$region0: #{tpu_custom_call.1}
  #allocation0 [shape = 'u32[]', space=smem, size = 0x4, offset = 0x4, fixed_abs, tag = 'smem constant byte address 0x4 - core index']
  #allocation1 [shape = 'u32[144,128]{1,0:T(1,128)}', space=vmem, size = 0x12000, scoped, tag = 'internal scratch']
  %s0 = inlined_call_operand.hbm [shape: f32[16,32], index: 0, kind: input, shape index: {}]
  %s1 = inlined_call_operand.vmem [shape: f32[32,96], index: 1, kind: input, shape index: {}]
  %s2 = inlined_call_operand.vmem [shape: f32[32,32], index: 2, kind: input, shape index: {}]
  %s3 = inlined_call_operand.vmem [shape: f32[1,32], index: 3, kind: input, shape index: {}]
  %s4 = inlined_call_operand.vmem [shape: f32[32,64], index: 4, kind: input, shape index: {}]
  %s5 = inlined_call_operand.vmem [shape: f32[1,64], index: 5, kind: input, shape index: {}]
  %s6 = inlined_call_operand.vmem [shape: f32[64,32], index: 6, kind: input, shape index: {}]
  %s7 = inlined_call_operand.vmem [shape: f32[1,32], index: 7, kind: input, shape index: {}]
  %s8 = inlined_call_operand.hbm [shape: f32[16,32], index: 8, kind: output, shape index: {}]
  %s9 = sld [smem:[#allocation0]]
  $region69: #{tpu_custom_call.1} parent=0
    _
  %s11 = ssub.s32 1, %s9
  %s12 = scalar_select 0, %s11, %s9
  $region1: #{tpu_custom_call.1} parent=0
    #allocation2 [shape = 'u8[8192]{0}', space=vmem, size = 0x2000, scoped, tag = 'input window, operand 0']
    #allocation3 [shape = 's32[2]{0}', space=sflag, size = 0x8, scoped, tag = 'scoped memory for tpu_custom_call.1']
    #allocation4 [shape = 's32[2]{0}', space=sflag, size = 0x8, scoped, tag = 'scoped memory for tpu_custom_call.1']
    #allocation5 [shape = 'u8[8192]{0}', space=vmem, size = 0x2000, scoped, tag = 'output window, operand 0']
    %13 = vsyncpa [#allocation3], 0
    %s14 = scalar_lea.sflag [#allocation3], 1
    %15 = vsyncpa %s14, 0
    %16 = vsyncpa [#allocation4], 0
    %s17 = scalar_lea.sflag [#allocation4], 1
    %18 = vsyncpa %s17, 0
    loop: start=0, step=1, limit=4
    $region2: #{tpu_custom_call.1} parent=1 // loop_pre_header
      _
    $region3: #{tpu_custom_call.1} parent=1 // loop_header
      %s20 = sphi 0, %s24
      %p21 = scmp.ge.s32.totalorder %s20, 4
      %s30 = sphi 0, %s32
      %s33 = sphi 0, %s30
      %s34 = sphi 0, %s33
      %s50 = sphi 0, %s34
      %s54 = sphi 0, %s54
      %s56 = sphi 0, %s54
      %s57 = sphi 0, %s56
      %s71 = sphi 0, %s57
      %s75 = sphi 0, %s75
      %s77 = sphi 0, %s75
      %s78 = sphi 0, %s77
      %s92 = sphi 0, %s78
      %s96 = sphi 0, %s96
      %s98 = sphi 0, %s96
      %s99 = sphi 0, %s98
      %s113 = sphi 0, %s99
      %s117 = sphi 0, %s117
      %s119 = sphi 0, %s117
      %s120 = sphi 0, %s119
      %s134 = sphi 0, %s120
      %s138 = sphi 0, %s138
      %s140 = sphi 0, %s138
      %s141 = sphi 0, %s140
      %s155 = sphi 0, %s141
      %s159 = sphi 0, %s159
      %s161 = sphi 0, %s159
      %s162 = sphi 0, %s161
      %s176 = sphi 0, %s162
      %s180 = sphi 0, %s180
      %s182 = sphi 0, %s180
      %s183 = sphi 0, %s182
      %s197 = sphi 0, %s183
      %s203 = sphi 0, %s205
      %s206 = sphi 0, %s203
      %s207 = sphi 0, %s206
      %s223 = sphi 0, %s207
    $region4: #{tpu_custom_call.1} parent=1 // loop_header_branch
      %23 = sbr.rel (%p21) target = $region8
    $region5: #{tpu_custom_call.1} parent=1 // loop_body
      %s25 = ssub.s32 %s20, 1
      %s26 = ssub.s32 %s20, 2
      %s27 = sadd.s32 %s20, 1
      %s28 = ssub.s32 %s20, %s27
      %p29 = scmp.eq.s32.totalorder %s28, 0
      %s31 = sadd.s32 %s30, 1
      %s32 = scalar_select %p29, %s30, %s31
      %p35 = pneg %p29
      %p36 = scmp.eq.s32.totalorder %s20, 1
      %p37 = por %p35, %p36
      %p38 = scmp.ne.s32.totalorder %s30, %s33
      %p39 = scmp.eq.s32.totalorder %s20, 0
      %p40 = por %p38, %p39
      %p41 = scmp.ne.s32.totalorder %s30, %s33
      %p42 = scmp.eq.s32.totalorder %s25, 1
      %p43 = por %p41, %p42
      %p44 = scmp.ne.s32.totalorder %s33, %s34
      %p45 = scmp.eq.s32.totalorder %s25, 0
      %p46 = por %p44, %p45
      %p47 = scmp.ne.s32.totalorder %s33, %s34
      %p48 = scmp.eq.s32.totalorder %s26, 1
      %p49 = por %p47, %p48
      %p51 = scmp.ne.s32.totalorder %s34, %s50
      %p52 = scmp.eq.s32.totalorder %s26, 0
      %p53 = por %p51, %p52
      %s55 = sadd.s32 %s54, 1
      %p58 = scmp.eq.s32.totalorder %s20, 1
      %p59 = scmp.ne.s32.totalorder %s54, %s56
      %p60 = scmp.eq.s32.totalorder %s20, 0
      %p61 = por %p59, %p60
      %p62 = scmp.ne.s32.totalorder %s54, %s56
      %p63 = scmp.eq.s32.totalorder %s25, 1
      %p64 = por %p62, %p63
      %p65 = scmp.ne.s32.totalorder %s56, %s57
      %p66 = scmp.eq.s32.totalorder %s25, 0
      %p67 = por %p65, %p66
      %p68 = scmp.ne.s32.totalorder %s56, %s57
      %p69 = scmp.eq.s32.totalorder %s26, 1
      %p70 = por %p68, %p69
      %p72 = scmp.ne.s32.totalorder %s57, %s71
      %p73 = scmp.eq.s32.totalorder %s26, 0
      %p74 = por %p72, %p73
      %s76 = sadd.s32 %s75, 1
      %p79 = scmp.eq.s32.totalorder %s20, 1
      %p80 = scmp.ne.s32.totalorder %s75, %s77
      %p81 = scmp.eq.s32.totalorder %s20, 0
      %p82 = por %p80, %p81
      %p83 = scmp.ne.s32.totalorder %s75, %s77
      %p84 = scmp.eq.s32.totalorder %s25, 1
      %p85 = por %p83, %p84
      %p86 = scmp.ne.s32.totalorder %s77, %s78
      %p87 = scmp.eq.s32.totalorder %s25, 0
      %p88 = por %p86, %p87
      %p89 = scmp.ne.s32.totalorder %s77, %s78
      %p90 = scmp.eq.s32.totalorder %s26, 1
      %p91 = por %p89, %p90
      %p93 = scmp.ne.s32.totalorder %s78, %s92
      %p94 = scmp.eq.s32.totalorder %s26, 0
      %p95 = por %p93, %p94
      %s97 = sadd.s32 %s96, 1
      %p100 = scmp.eq.s32.totalorder %s20, 1
      %p101 = scmp.ne.s32.totalorder %s96, %s98
      %p102 = scmp.eq.s32.totalorder %s20, 0
      %p103 = por %p101, %p102
      %p104 = scmp.ne.s32.totalorder %s96, %s98
      %p105 = scmp.eq.s32.totalorder %s25, 1
      %p106 = por %p104, %p105
      %p107 = scmp.ne.s32.totalorder %s98, %s99
      %p108 = scmp.eq.s32.totalorder %s25, 0
      %p109 = por %p107, %p108
      %p110 = scmp.ne.s32.totalorder %s98, %s99
      %p111 = scmp.eq.s32.totalorder %s26, 1
      %p112 = por %p110, %p111
      %p114 = scmp.ne.s32.totalorder %s99, %s113
      %p115 = scmp.eq.s32.totalorder %s26, 0
      %p116 = por %p114, %p115
      %s118 = sadd.s32 %s117, 1
      %p121 = scmp.eq.s32.totalorder %s20, 1
      %p122 = scmp.ne.s32.totalorder %s117, %s119
      %p123 = scmp.eq.s32.totalorder %s20, 0
      %p124 = por %p122, %p123
      %p125 = scmp.ne.s32.totalorder %s117, %s119
      %p126 = scmp.eq.s32.totalorder %s25, 1
      %p127 = por %p125, %p126
      %p128 = scmp.ne.s32.totalorder %s119, %s120
      %p129 = scmp.eq.s32.totalorder %s25, 0
      %p130 = por %p128, %p129
      %p131 = scmp.ne.s32.totalorder %s119, %s120
      %p132 = scmp.eq.s32.totalorder %s26, 1
      %p133 = por %p131, %p132
      %p135 = scmp.ne.s32.totalorder %s120, %s134
      %p136 = scmp.eq.s32.totalorder %s26, 0
      %p137 = por %p135, %p136
      %s139 = sadd.s32 %s138, 1
      %p142 = scmp.eq.s32.totalorder %s20, 1
      %p143 = scmp.ne.s32.totalorder %s138, %s140
      %p144 = scmp.eq.s32.totalorder %s20, 0
      %p145 = por %p143, %p144
      %p146 = scmp.ne.s32.totalorder %s138, %s140
      %p147 = scmp.eq.s32.totalorder %s25, 1
      %p148 = por %p146, %p147
      %p149 = scmp.ne.s32.totalorder %s140, %s141
      %p150 = scmp.eq.s32.totalorder %s25, 0
      %p151 = por %p149, %p150
      %p152 = scmp.ne.s32.totalorder %s140, %s141
      %p153 = scmp.eq.s32.totalorder %s26, 1
      %p154 = por %p152, %p153
      %p156 = scmp.ne.s32.totalorder %s141, %s155
      %p157 = scmp.eq.s32.totalorder %s26, 0
      %p158 = por %p156, %p157
      %s160 = sadd.s32 %s159, 1
      %p163 = scmp.eq.s32.totalorder %s20, 1
      %p164 = scmp.ne.s32.totalorder %s159, %s161
      %p165 = scmp.eq.s32.totalorder %s20, 0
      %p166 = por %p164, %p165
      %p167 = scmp.ne.s32.totalorder %s159, %s161
      %p168 = scmp.eq.s32.totalorder %s25, 1
      %p169 = por %p167, %p168
      %p170 = scmp.ne.s32.totalorder %s161, %s162
      %p171 = scmp.eq.s32.totalorder %s25, 0
      %p172 = por %p170, %p171
      %p173 = scmp.ne.s32.totalorder %s161, %s162
      %p174 = scmp.eq.s32.totalorder %s26, 1
      %p175 = por %p173, %p174
      %p177 = scmp.ne.s32.totalorder %s162, %s176
      %p178 = scmp.eq.s32.totalorder %s26, 0
      %p179 = por %p177, %p178
      %s181 = sadd.s32 %s180, 1
      %p184 = scmp.eq.s32.totalorder %s20, 1
      %p185 = scmp.ne.s32.totalorder %s180, %s182
      %p186 = scmp.eq.s32.totalorder %s20, 0
      %p187 = por %p185, %p186
      %p188 = scmp.ne.s32.totalorder %s180, %s182
      %p189 = scmp.eq.s32.totalorder %s25, 1
      %p190 = por %p188, %p189
      %p191 = scmp.ne.s32.totalorder %s182, %s183
      %p192 = scmp.eq.s32.totalorder %s25, 0
      %p193 = por %p191, %p192
      %p194 = scmp.ne.s32.totalorder %s182, %s183
      %p195 = scmp.eq.s32.totalorder %s26, 1
      %p196 = por %p194, %p195
      %p198 = scmp.ne.s32.totalorder %s183, %s197
      %p199 = scmp.eq.s32.totalorder %s26, 0
      %p200 = por %p198, %p199
      %s201 = ssub.s32 %s20, %s27
      %p202 = scmp.eq.s32.totalorder %s201, 0
      %s204 = sadd.s32 %s203, 1
      %s205 = scalar_select %p202, %s203, %s204
      %p208 = pneg %p202
      %p209 = scmp.eq.s32.totalorder %s20, 1
      %p210 = por %p208, %p209
      %p211 = scmp.ne.s32.totalorder %s203, %s206
      %p212 = scmp.eq.s32.totalorder %s20, 0
      %p213 = por %p211, %p212
      %p214 = scmp.ne.s32.totalorder %s203, %s206
      %p215 = scmp.eq.s32.totalorder %s25, 1
      %p216 = por %p214, %p215
      %p217 = scmp.ne.s32.totalorder %s206, %s207
      %p218 = scmp.eq.s32.totalorder %s25, 0
      %p219 = por %p217, %p218
      %p220 = scmp.ne.s32.totalorder %s206, %s207
      %p221 = scmp.eq.s32.totalorder %s26, 1
      %p222 = por %p220, %p221
      %p224 = scmp.ne.s32.totalorder %s207, %s223
      %p225 = scmp.eq.s32.totalorder %s26, 0
      %p226 = por %p224, %p225
      %p227 = scmp.le.s32.totalorder 1, %s20
      %p228 = scmp.lt.s32.totalorder %s20, 3
      %p229 = pnand %p227, %p228
      %p230 = pneg %p229
      // Predicated region
      $region9: #{tpu_custom_call.1} parent=5 // pred_check
        _
      $region10: #{tpu_custom_call.1} parent=5 // pred_check_branch
        %232 = sbr.rel (%p229) target = $region12
      $region11: #{tpu_custom_call.1} parent=5 // pred_region
        %s233 = ssub.s32 %s20, 1
        // Predicated region
        $region13: #{tpu_custom_call.1} parent=11 // pred_check
          %p234 = pneg %p67
        $region14: #{tpu_custom_call.1} parent=11 // pred_check_branch
          %236 = sbr.rel (%p234) target = $region16
        $region15: #{tpu_custom_call.1} parent=11 // pred_region
          _
        $region16: #{tpu_custom_call.1} parent=11 // pred_fallthru
          _
        // Predicated region
        $region17: #{tpu_custom_call.1} parent=11 // pred_check
          %p237 = pneg %p88
        $region18: #{tpu_custom_call.1} parent=11 // pred_check_branch
          %239 = sbr.rel (%p237) target = $region20
        $region19: #{tpu_custom_call.1} parent=11 // pred_region
          _
        $region20: #{tpu_custom_call.1} parent=11 // pred_fallthru
          _
        // Predicated region
        $region21: #{tpu_custom_call.1} parent=11 // pred_check
          %p240 = pneg %p109
        $region22: #{tpu_custom_call.1} parent=11 // pred_check_branch
          %242 = sbr.rel (%p240) target = $region24
        $region23: #{tpu_custom_call.1} parent=11 // pred_region
          _
        $region24: #{tpu_custom_call.1} parent=11 // pred_fallthru
          _
        // Predicated region
        $region25: #{tpu_custom_call.1} parent=11 // pred_check
          %p243 = pneg %p130
        $region26: #{tpu_custom_call.1} parent=11 // pred_check_branch
          %245 = sbr.rel (%p243) target = $region28
        $region27: #{tpu_custom_call.1} parent=11 // pred_region
          _
        $region28: #{tpu_custom_call.1} parent=11 // pred_fallthru
          _
        // Predicated region
        $region29: #{tpu_custom_call.1} parent=11 // pred_check
          %p246 = pneg %p151
        $region30: #{tpu_custom_call.1} parent=11 // pred_check_branch
          %248 = sbr.rel (%p246) target = $region32
        $region31: #{tpu_custom_call.1} parent=11 // pred_region
          _
        $region32: #{tpu_custom_call.1} parent=11 // pred_fallthru
          _
        // Predicated region
        $region33: #{tpu_custom_call.1} parent=11 // pred_check
          %p249 = pneg %p172
        $region34: #{tpu_custom_call.1} parent=11 // pred_check_branch
          %251 = sbr.rel (%p249) target = $region36
        $region35: #{tpu_custom_call.1} parent=11 // pred_region
          _
        $region36: #{tpu_custom_call.1} parent=11 // pred_fallthru
          _
        // Predicated region
        $region37: #{tpu_custom_call.1} parent=11 // pred_check
          %p252 = pneg %p193
        $region38: #{tpu_custom_call.1} parent=11 // pred_check_branch
          %254 = sbr.rel (%p252) target = $region40
        $region39: #{tpu_custom_call.1} parent=11 // pred_region
          _
        $region40: #{tpu_custom_call.1} parent=11 // pred_fallthru
          _
      $region12: #{tpu_custom_call.1} parent=5 // pred_fallthru
        _
      %p255 = scmp.lt.s32.totalorder %s20, 2
      // Predicated region
      $region41: #{tpu_custom_call.1} parent=5 // pred_check
        %p256 = pneg %p255
      $region42: #{tpu_custom_call.1} parent=5 // pred_check_branch
        %258 = sbr.rel (%p256) target = $region44
      $region43: #{tpu_custom_call.1} parent=5 // pred_region
        // Predicated region
        $region45: #{tpu_custom_call.1} parent=43 // pred_check
          %p259 = pneg %p40
        $region46: #{tpu_custom_call.1} parent=43 // pred_check_branch
          %261 = sbr.rel (%p259) target = $region48
        $region47: #{tpu_custom_call.1} parent=43 // pred_region
          %s262 = sand.u32 %s30, 1
          %s263 = scalar_lea.sflag [#allocation3], %s262
          %s264 = sand.u32 %s30, 1
          %s265 = smul.addr %s264, 8
          %s266 = scalar_lea.vmem [#allocation2], %s265
          %s268 = ssub.s32 128, 128
          %269 = vsyncadd %s263, %s268
          %s270 = smul.addr %s20, 128
          %s271 = scalar_lea.hbm %s0, %s270
          %s273 = sshll.u32 %s266, 4
          %s274 = int_to_ptr.vmem [resolvable:$true] %s273
          %276 = dma.hbm_to_vmem [thread:$0]  %s271, 128, %s274, %s263
        $region48: #{tpu_custom_call.1} parent=43 // pred_fallthru
          _
      $region44: #{tpu_custom_call.1} parent=5 // pred_fallthru
        _
      %p277 = scmp.le.s32.totalorder 1, %s20
      %p278 = scmp.lt.s32.totalorder %s20, 3
      %p279 = pnand %p277, %p278
      %p280 = pneg %p279
      // Predicated region
      $region49: #{tpu_custom_call.1} parent=5 // pred_check
        _
      $region50: #{tpu_custom_call.1} parent=5 // pred_check_branch
        %282 = sbr.rel (%p279) target = $region52
      $region51: #{tpu_custom_call.1} parent=5 // pred_region
        %s283 = ssub.s32 %s20, 1
        %s284 = sand.u32 %s33, 1
        %s285 = scalar_lea.sflag [#allocation3], %s284
        %s286 = sand.u32 %s33, 1
        %s287 = smul.addr %s286, 8
        %s288 = scalar_lea.vmem [#allocation2], %s287
        // Predicated region
        $region53: #{tpu_custom_call.1} parent=51 // pred_check
          %p289 = pneg %p46
        $region54: #{tpu_custom_call.1} parent=51 // pred_check_branch
          %291 = sbr.rel (%p289) target = $region56
        $region55: #{tpu_custom_call.1} parent=51 // pred_region
          %292 = dma.done %s285, 128
        $region56: #{tpu_custom_call.1} parent=51 // pred_fallthru
          _
        %s293 = sand.u32 %s33, 1
        %s294 = scalar_lea.sflag [#allocation3], %s293
        %s295 = sand.u32 %s33, 1
        %s296 = smul.addr %s295, 8
        %s297 = scalar_lea.vmem [#allocation2], %s296
        %p298 = pneg %p46
        %p299 = pneg %p43
        %p300 = pneg %p67
        %p301 = pneg %p64
        %p302 = pneg %p88
        %p303 = pneg %p85
        %p304 = pneg %p109
        %p305 = pneg %p106
        %p306 = pneg %p130
        %p307 = pneg %p127
        %p308 = pneg %p151
        %p309 = pneg %p148
        %p310 = pneg %p172
        %p311 = pneg %p169
        %p312 = pneg %p193
        %p313 = pneg %p190
        %p314 = pneg %p219
        %p315 = pneg %p216
        %s316 = sand.u32 %s206, 1
        %s317 = scalar_lea.sflag [#allocation4], %s316
        %s318 = sand.u32 %s206, 1
        %s319 = smul.addr %s318, 8
        %s320 = scalar_lea.vmem [#allocation5], %s319
        %v321 = vld [vmem:[%s288] sm:$0xff]
        %v322 = vld [vmem:[%s1] sm:$0xff]
        %v323 = vld [vmem:[%s1 + $0x8] sm:$0xff]
        %v324 = vld [vmem:[%s1 + $0x10] sm:$0xff]
        %v325 = vld [vmem:[%s1 + $0x18] sm:$0xff]
        %vm326 = vcmask 261120
        %v328 = vsel %vm326, %v321, 0
        %330 = vmatprep.subr.mxu0 0.0
        %331 = vmatpush1.msra.mxu0 0.0
        %332 = vmatprep.subr.mxu0 0.0
        %333 = vmatpush1.msra.mxu0 0.0
        %334 = vmatprep.subr.mxu0 0.0
        %335 = vmatpush1.msra.mxu0 0.0
        %336 = vmatprep.subr.mxu0 0.0
        %337 = vmatpush1.msra.mxu0 0.0
        %338 = vmatprep.subr.mxu0 0.0
        %339 = vmatpush1.msra.mxu0 0.0
        %340 = vmatprep.subr.mxu0 0.0
        %341 = vmatpush1.msra.mxu0 0.0
        %342 = vmatprep.subr.mxu0 0.0
        %343 = vmatpush1.msra.mxu0 0.0
        %344 = vmatprep.subr.mxu0 0.0
        %345 = vmatpush1.msra.mxu0 0.0
        %346 = vmatprep.subr.mxu0 0.0
        %347 = vmatpush1.msra.mxu0 0.0
        %348 = vmatprep.subr.mxu0 0.0
        %349 = vmatpush1.msra.mxu0 0.0
        %350 = vmatprep.subr.mxu0 0.0
        %351 = vmatpush1.msra.mxu0 0.0
        %352 = vmatprep.subr.mxu0 0.0
        %353 = vmatpush1.msra.mxu0 0.0
        %354 = vmatprep.subr.mxu0 0.0
        %355 = vmatpush1.msra.mxu0 %v325
        %356 = vmatprep.subr.mxu0 0.0
        %357 = vmatpush1.msra.mxu0 %v324
        %358 = vmatprep.subr.mxu0 0.0
        %359 = vmatpush1.msra.mxu0 %v323
        %360 = vmatprep.subr.mxu0 0.0
        %361 = vmatpush1.msra.mxu0 %v322
        %362 = vmatprep.subr.mxu0 0.0
        %363 = vmatpush2.msra.mxu0 0.0
        %364 = vmatprep.subr.mxu0 0.0
        %365 = vmatpush2.msra.mxu0 0.0
        %366 = vmatprep.subr.mxu0 0.0
        %367 = vmatpush2.msra.mxu0 0.0
        %368 = vmatprep.subr.mxu0 0.0
        %369 = vmatpush2.msra.mxu0 0.0
        %370 = vmatprep.subr.mxu0 0.0
        %371 = vmatpush2.msra.mxu0 0.0
        %372 = vmatprep.subr.mxu0 0.0
        %373 = vmatpush2.msra.mxu0 0.0
        %374 = vmatprep.subr.mxu0 0.0
        %375 = vmatpush2.msra.mxu0 0.0
        %376 = vmatprep.subr.mxu0 0.0
        %377 = vmatpush2.msra.mxu0 0.0
        %378 = vmatprep.subr.mxu0 0.0
        %379 = vmatpush2.msra.mxu0 0.0
        %380 = vmatprep.subr.mxu0 0.0
        %381 = vmatpush2.msra.mxu0 0.0
        %382 = vmatprep.subr.mxu0 0.0
        %383 = vmatpush2.msra.mxu0 0.0
        %384 = vmatprep.subr.mxu0 0.0
        %385 = vmatpush2.msra.mxu0 0.0
        %386 = vmatprep.subr.mxu0 0.0
        %387 = vmatpush2.msra.mxu0 0.0
        %388 = vmatprep.subr.mxu0 0.0
        %389 = vmatpush2.msra.mxu0 0.0
        %390 = vmatprep.subr.mxu0 0.0
        %391 = vmatpush2.msra.mxu0 0.0
        %392 = vmatprep.subr.mxu0 0.0
        %393 = vmatpush2.msra.mxu0 0.0
        %394 = vmatprep.mubr.f32.mxu0 0.0
        %395 = vmatmul.mubr.f32.gmra.mxu0 %v328
        %v396 = vpop.f32.mrf.mxu0
        %v397 = vadd.f32 0.0, %v396
        %v398 = vpop.f32.mrf.mxu0
        %399 = vdwg.mxu0
        %v400 = vmul.f32 %v397, 0.35355338
        %402 = vrot.lane.b32.xlu0 %v400, 120
        %v403 = vpop.permute.xlu0 %402
        %405 = vrot.lane.b32.xlu0 %v400, 112
        %v406 = vpop.permute.xlu0 %405
        %408 = vrot.lane.b32.xlu0 %v400, 104
        %v409 = vpop.permute.xlu0 %408
        %v411 = vcombine.low %v400, %v406
        %v412 = vcombine.high %v400, %v406
        %v414 = vunpack.c.l.s4 1983009808
        %v415 = vunpack.c.0.s8 %v414
        %v416 = vlaneseq
        %v417 = vshrl.u32 %v416, 7
        %v418 = vsub.s32 %v415, %v417
        %v419 = vrot.slane %v411, %v418
        %v421 = vunpack.c.l.s4 1983009808
        %v422 = vunpack.c.0.s8 %v421
        %v423 = vlaneseq
        %v424 = vshrl.u32 %v423, 7
        %v425 = vsub.s32 %v422, %v424
        %v426 = vrot.slane %v412, %v425
        %v427 = vcombine.low %v403, %v409
        %v428 = vcombine.high %v403, %v409
        %v430 = vunpack.c.l.s4 1983009808
        %v431 = vunpack.c.0.s8 %v430
        %v432 = vlaneseq
        %v433 = vshrl.u32 %v432, 7
        %v434 = vsub.s32 %v431, %v433
        %v435 = vrot.slane %v427, %v434
        %v437 = vunpack.c.l.s4 1983009808
        %v438 = vunpack.c.0.s8 %v437
        %v439 = vlaneseq
        %v440 = vshrl.u32 %v439, 7
        %v441 = vsub.s32 %v438, %v440
        %v442 = vrot.slane %v428, %v441
        %v443 = vcombine.low %v419, %v435
        %v444 = vcombine.high %v419, %v435
        %v446 = vunpack.c.l.s4 1934713408
        %v447 = vunpack.c.0.s8 %v446
        %v448 = vlaneseq
        %v449 = vshrl.u32 %v448, 7
        %v450 = vsub.s32 %v447, %v449
        %v451 = vrot.slane %v443, %v450
        %v453 = vunpack.c.l.s4 1934713408
        %v454 = vunpack.c.0.s8 %v453
        %v455 = vlaneseq
        %v456 = vshrl.u32 %v455, 7
        %v457 = vsub.s32 %v454, %v456
        %v458 = vrot.slane %v444, %v457
        %v459 = vcombine.low %v426, %v442
        %v460 = vcombine.high %v426, %v442
        %v462 = vunpack.c.l.s4 1934713408
        %v463 = vunpack.c.0.s8 %v462
        %v464 = vlaneseq
        %v465 = vshrl.u32 %v464, 7
        %v466 = vsub.s32 %v463, %v465
        %v467 = vrot.slane %v459, %v466
        %v469 = vunpack.c.l.s4 1934713408
        %v470 = vunpack.c.0.s8 %v469
        %v471 = vlaneseq
        %v472 = vshrl.u32 %v471, 7
        %v473 = vsub.s32 %v470, %v472
        %v474 = vrot.slane %v460, %v473
        %v475 = vcombine.high %v451, 0.0
        %v476 = vcombine.high %v458, 0.0
        %v477 = vcombine.high %v467, 0.0
        %v478 = vcombine.high %v474, 0.0
        %v479 = vcombine.low %v451, %v458
        %v481 = vunpack.c.l.s4 1983009808
        %v482 = vunpack.c.0.s8 %v481
        %v483 = vlaneseq
        %v484 = vshrl.u32 %v483, 7
        %v485 = vsub.s32 %v482, %v484
        %v486 = vrot.slane %v479, %v485
        %v487 = vcombine.low %v475, %v476
        %v489 = vunpack.c.l.s4 1983009808
        %v490 = vunpack.c.0.s8 %v489
        %v491 = vlaneseq
        %v492 = vshrl.u32 %v491, 7
        %v493 = vsub.s32 %v490, %v492
        %v494 = vrot.slane %v487, %v493
        %v495 = vcombine.low %v467, %v474
        %v497 = vunpack.c.l.s4 1983009808
        %v498 = vunpack.c.0.s8 %v497
        %v499 = vlaneseq
        %v500 = vshrl.u32 %v499, 7
        %v501 = vsub.s32 %v498, %v500
        %v502 = vrot.slane %v495, %v501
        %v503 = vcombine.low %v477, %v478
        %v505 = vunpack.c.l.s4 1983009808
        %v506 = vunpack.c.0.s8 %v505
        %v507 = vlaneseq
        %v508 = vshrl.u32 %v507, 7
        %v509 = vsub.s32 %v506, %v508
        %v510 = vrot.slane %v503, %v509
        %v511 = vcombine.low %v486, %v494
        %v512 = vcombine.high %v486, %v494
        %v514 = vunpack.c.l.s4 1934713408
        %v515 = vunpack.c.0.s8 %v514
        %v516 = vlaneseq
        %v517 = vshrl.u32 %v516, 7
        %v518 = vsub.s32 %v515, %v517
        %v519 = vrot.slane %v511, %v518
        %v521 = vunpack.c.l.s4 1934713408
        %v522 = vunpack.c.0.s8 %v521
        %v523 = vlaneseq
        %v524 = vshrl.u32 %v523, 7
        %v525 = vsub.s32 %v522, %v524
        %v526 = vrot.slane %v512, %v525
        %v527 = vcombine.low %v502, %v510
        %v528 = vcombine.high %v502, %v510
        %v530 = vunpack.c.l.s4 1934713408
        %v531 = vunpack.c.0.s8 %v530
        %v532 = vlaneseq
        %v533 = vshrl.u32 %v532, 7
        %v534 = vsub.s32 %v531, %v533
        %v535 = vrot.slane %v527, %v534
        %v537 = vunpack.c.l.s4 1934713408
        %v538 = vunpack.c.0.s8 %v537
        %v539 = vlaneseq
        %v540 = vshrl.u32 %v539, 7
        %v541 = vsub.s32 %v538, %v540
        %v542 = vrot.slane %v528, %v541
        %v543 = vcombine.low %v519, %v535
        %v544 = vcombine.high %v519, %v535
        %v545 = vcombine.low %v526, %v542
        %v546 = vcombine.high %v526, %v542
        %548 = vrot.lane.b32.xlu0 %v397, 120
        %v549 = vpop.permute.xlu0 %548
        %550 = vrot.lane.b32.xlu0 %v397, 112
        %v551 = vpop.permute.xlu0 %550
        %552 = vrot.lane.b32.xlu0 %v397, 104
        %v553 = vpop.permute.xlu0 %552
        %554 = vrot.lane.b32.xlu0 %v397, 96
        %v555 = vpop.permute.xlu0 %554
        %556 = vrot.lane.b32.xlu0 %v549, 96
        %v557 = vpop.permute.xlu0 %556
        %558 = vrot.lane.b32.xlu0 %v551, 96
        %v559 = vpop.permute.xlu0 %558
        %560 = vrot.lane.b32.xlu0 %v553, 96
        %v561 = vpop.permute.xlu0 %560
        %v566 = vcombine.low %v555, %v559
        %v567 = vcombine.high %v555, %v559
        %v569 = vunpack.c.l.s4 1983009808
        %v570 = vunpack.c.0.s8 %v569
        %v571 = vlaneseq
        %v572 = vshrl.u32 %v571, 7
        %v573 = vsub.s32 %v570, %v572
        %v574 = vrot.slane %v566, %v573
        %v576 = vunpack.c.l.s4 1983009808
        %v577 = vunpack.c.0.s8 %v576
        %v578 = vlaneseq
        %v579 = vshrl.u32 %v578, 7
        %v580 = vsub.s32 %v577, %v579
        %v581 = vrot.slane %v567, %v580
        %v582 = vcombine.low %v557, %v561
        %v583 = vcombine.high %v557, %v561
        %v585 = vunpack.c.l.s4 1983009808
        %v586 = vunpack.c.0.s8 %v585
        %v587 = vlaneseq
        %v588 = vshrl.u32 %v587, 7
        %v589 = vsub.s32 %v586, %v588
        %v590 = vrot.slane %v582, %v589
        %v592 = vunpack.c.l.s4 1983009808
        %v593 = vunpack.c.0.s8 %v592
        %v594 = vlaneseq
        %v595 = vshrl.u32 %v594, 7
        %v596 = vsub.s32 %v593, %v595
        %v597 = vrot.slane %v583, %v596
        %v598 = vcombine.low %v574, %v590
        %v599 = vcombine.high %v574, %v590
        %v601 = vunpack.c.l.s4 1934713408
        %v602 = vunpack.c.0.s8 %v601
        %v603 = vlaneseq
        %v604 = vshrl.u32 %v603, 7
        %v605 = vsub.s32 %v602, %v604
        %v606 = vrot.slane %v598, %v605
        %v608 = vunpack.c.l.s4 1934713408
        %v609 = vunpack.c.0.s8 %v608
        %v610 = vlaneseq
        %v611 = vshrl.u32 %v610, 7
        %v612 = vsub.s32 %v609, %v611
        %v613 = vrot.slane %v599, %v612
        %v614 = vcombine.low %v581, %v597
        %v615 = vcombine.high %v581, %v597
        %v617 = vunpack.c.l.s4 1934713408
        %v618 = vunpack.c.0.s8 %v617
        %v619 = vlaneseq
        %v620 = vshrl.u32 %v619, 7
        %v621 = vsub.s32 %v618, %v620
        %v622 = vrot.slane %v614, %v621
        %v624 = vunpack.c.l.s4 1934713408
        %v625 = vunpack.c.0.s8 %v624
        %v626 = vlaneseq
        %v627 = vshrl.u32 %v626, 7
        %v628 = vsub.s32 %v625, %v627
        %v629 = vrot.slane %v615, %v628
        %v630 = vcombine.high %v606, 0.0
        %v631 = vcombine.high %v613, 0.0
        %v632 = vcombine.high %v622, 0.0
        %v633 = vcombine.high %v629, 0.0
        %v634 = vcombine.low %v606, %v613
        %v636 = vunpack.c.l.s4 1983009808
        %v637 = vunpack.c.0.s8 %v636
        %v638 = vlaneseq
        %v639 = vshrl.u32 %v638, 7
        %v640 = vsub.s32 %v637, %v639
        %v641 = vrot.slane %v634, %v640
        %v642 = vcombine.low %v630, %v631
        %v644 = vunpack.c.l.s4 1983009808
        %v645 = vunpack.c.0.s8 %v644
        %v646 = vlaneseq
        %v647 = vshrl.u32 %v646, 7
        %v648 = vsub.s32 %v645, %v647
        %v649 = vrot.slane %v642, %v648
        %v650 = vcombine.low %v622, %v629
        %v652 = vunpack.c.l.s4 1983009808
        %v653 = vunpack.c.0.s8 %v652
        %v654 = vlaneseq
        %v655 = vshrl.u32 %v654, 7
        %v656 = vsub.s32 %v653, %v655
        %v657 = vrot.slane %v650, %v656
        %v658 = vcombine.low %v632, %v633
        %v660 = vunpack.c.l.s4 1983009808
        %v661 = vunpack.c.0.s8 %v660
        %v662 = vlaneseq
        %v663 = vshrl.u32 %v662, 7
        %v664 = vsub.s32 %v661, %v663
        %v665 = vrot.slane %v658, %v664
        %v666 = vcombine.low %v641, %v649
        %v667 = vcombine.high %v641, %v649
        %v669 = vunpack.c.l.s4 1934713408
        %v670 = vunpack.c.0.s8 %v669
        %v671 = vlaneseq
        %v672 = vshrl.u32 %v671, 7
        %v673 = vsub.s32 %v670, %v672
        %v674 = vrot.slane %v666, %v673
        %v676 = vunpack.c.l.s4 1934713408
        %v677 = vunpack.c.0.s8 %v676
        %v678 = vlaneseq
        %v679 = vshrl.u32 %v678, 7
        %v680 = vsub.s32 %v677, %v679
        %v681 = vrot.slane %v667, %v680
        %v682 = vcombine.low %v657, %v665
        %v683 = vcombine.high %v657, %v665
        %v685 = vunpack.c.l.s4 1934713408
        %v686 = vunpack.c.0.s8 %v685
        %v687 = vlaneseq
        %v688 = vshrl.u32 %v687, 7
        %v689 = vsub.s32 %v686, %v688
        %v690 = vrot.slane %v682, %v689
        %v692 = vunpack.c.l.s4 1934713408
        %v693 = vunpack.c.0.s8 %v692
        %v694 = vlaneseq
        %v695 = vshrl.u32 %v694, 7
        %v696 = vsub.s32 %v693, %v695
        %v697 = vrot.slane %v683, %v696
        %v698 = vcombine.low %v674, %v690
        %v699 = vcombine.high %v674, %v690
        %v700 = vcombine.low %v681, %v697
        %v701 = vcombine.high %v681, %v697
        %702 = vrot.lane.b32.xlu0 %v397, 64
        %v703 = vpop.permute.xlu0 %702
        %704 = vrot.lane.b32.xlu0 %v549, 64
        %v705 = vpop.permute.xlu0 %704
        %706 = vrot.lane.b32.xlu0 %v551, 64
        %v707 = vpop.permute.xlu0 %706
        %708 = vrot.lane.b32.xlu0 %v553, 64
        %v709 = vpop.permute.xlu0 %708
        %v714 = vcombine.low %v703, %v707
        %v715 = vcombine.high %v703, %v707
        %v717 = vunpack.c.l.s4 1983009808
        %v718 = vunpack.c.0.s8 %v717
        %v719 = vlaneseq
        %v720 = vshrl.u32 %v719, 7
        %v721 = vsub.s32 %v718, %v720
        %v722 = vrot.slane %v714, %v721
        %v724 = vunpack.c.l.s4 1983009808
        %v725 = vunpack.c.0.s8 %v724
        %v726 = vlaneseq
        %v727 = vshrl.u32 %v726, 7
        %v728 = vsub.s32 %v725, %v727
        %v729 = vrot.slane %v715, %v728
        %v730 = vcombine.low %v705, %v709
        %v731 = vcombine.high %v705, %v709
        %v733 = vunpack.c.l.s4 1983009808
        %v734 = vunpack.c.0.s8 %v733
        %v735 = vlaneseq
        %v736 = vshrl.u32 %v735, 7
        %v737 = vsub.s32 %v734, %v736
        %v738 = vrot.slane %v730, %v737
        %v740 = vunpack.c.l.s4 1983009808
        %v741 = vunpack.c.0.s8 %v740
        %v742 = vlaneseq
        %v743 = vshrl.u32 %v742, 7
        %v744 = vsub.s32 %v741, %v743
        %v745 = vrot.slane %v731, %v744
        %v746 = vcombine.low %v722, %v738
        %v747 = vcombine.high %v722, %v738
        %v749 = vunpack.c.l.s4 1934713408
        %v750 = vunpack.c.0.s8 %v749
        %v751 = vlaneseq
        %v752 = vshrl.u32 %v751, 7
        %v753 = vsub.s32 %v750, %v752
        %v754 = vrot.slane %v746, %v753
        %v756 = vunpack.c.l.s4 1934713408
        %v757 = vunpack.c.0.s8 %v756
        %v758 = vlaneseq
        %v759 = vshrl.u32 %v758, 7
        %v760 = vsub.s32 %v757, %v759
        %v761 = vrot.slane %v747, %v760
        %v762 = vcombine.low %v729, %v745
        %v763 = vcombine.high %v729, %v745
        %v765 = vunpack.c.l.s4 1934713408
        %v766 = vunpack.c.0.s8 %v765
        %v767 = vlaneseq
        %v768 = vshrl.u32 %v767, 7
        %v769 = vsub.s32 %v766, %v768
        %v770 = vrot.slane %v762, %v769
        %v772 = vunpack.c.l.s4 1934713408
        %v773 = vunpack.c.0.s8 %v772
        %v774 = vlaneseq
        %v775 = vshrl.u32 %v774, 7
        %v776 = vsub.s32 %v773, %v775
        %v777 = vrot.slane %v763, %v776
        %v778 = vcombine.high %v754, 0.0
        %v779 = vcombine.high %v761, 0.0
        %v780 = vcombine.high %v770, 0.0
        %v781 = vcombine.high %v777, 0.0
        %v782 = vcombine.low %v754, %v761
        %v784 = vunpack.c.l.s4 1983009808
        %v785 = vunpack.c.0.s8 %v784
        %v786 = vlaneseq
        %v787 = vshrl.u32 %v786, 7
        %v788 = vsub.s32 %v785, %v787
        %v789 = vrot.slane %v782, %v788
        %v790 = vcombine.low %v778, %v779
        %v792 = vunpack.c.l.s4 1983009808
        %v793 = vunpack.c.0.s8 %v792
        %v794 = vlaneseq
        %v795 = vshrl.u32 %v794, 7
        %v796 = vsub.s32 %v793, %v795
        %v797 = vrot.slane %v790, %v796
        %v798 = vcombine.low %v770, %v777
        %v800 = vunpack.c.l.s4 1983009808
        %v801 = vunpack.c.0.s8 %v800
        %v802 = vlaneseq
        %v803 = vshrl.u32 %v802, 7
        %v804 = vsub.s32 %v801, %v803
        %v805 = vrot.slane %v798, %v804
        %v806 = vcombine.low %v780, %v781
        %v808 = vunpack.c.l.s4 1983009808
        %v809 = vunpack.c.0.s8 %v808
        %v810 = vlaneseq
        %v811 = vshrl.u32 %v810, 7
        %v812 = vsub.s32 %v809, %v811
        %v813 = vrot.slane %v806, %v812
        %v814 = vcombine.low %v789, %v797
        %v815 = vcombine.high %v789, %v797
        %v817 = vunpack.c.l.s4 1934713408
        %v818 = vunpack.c.0.s8 %v817
        %v819 = vlaneseq
        %v820 = vshrl.u32 %v819, 7
        %v821 = vsub.s32 %v818, %v820
        %v822 = vrot.slane %v814, %v821
        %v824 = vunpack.c.l.s4 1934713408
        %v825 = vunpack.c.0.s8 %v824
        %v826 = vlaneseq
        %v827 = vshrl.u32 %v826, 7
        %v828 = vsub.s32 %v825, %v827
        %v829 = vrot.slane %v815, %v828
        %v830 = vcombine.low %v805, %v813
        %v831 = vcombine.high %v805, %v813
        %v833 = vunpack.c.l.s4 1934713408
        %v834 = vunpack.c.0.s8 %v833
        %v835 = vlaneseq
        %v836 = vshrl.u32 %v835, 7
        %v837 = vsub.s32 %v834, %v836
        %v838 = vrot.slane %v830, %v837
        %v840 = vunpack.c.l.s4 1934713408
        %v841 = vunpack.c.0.s8 %v840
        %v842 = vlaneseq
        %v843 = vshrl.u32 %v842, 7
        %v844 = vsub.s32 %v841, %v843
        %v845 = vrot.slane %v831, %v844
        %v846 = vcombine.low %v822, %v838
        %v847 = vcombine.high %v822, %v838
        %v848 = vcombine.low %v829, %v845
        %v849 = vcombine.high %v829, %v845
        %vm850 = vcmask 64512
        %v852 = vsel %vm850, %v543, 0
        %v855 = vsel %vm850, %v698, 0
        %857 = vmatprep.subr.mxu0 0.0
        %858 = vmatpush1.xpose.msra.mxu0 0.0
        %859 = vmatprep.subr.mxu0 0.0
        %860 = vmatpush1.xpose.msra.mxu0 0.0
        %861 = vmatprep.subr.mxu0 0.0
        %862 = vmatpush1.xpose.msra.mxu0 0.0
        %863 = vmatprep.subr.mxu0 0.0
        %864 = vmatpush1.xpose.msra.mxu0 0.0
        %865 = vmatprep.subr.mxu0 0.0
        %866 = vmatpush1.xpose.msra.mxu0 0.0
        %867 = vmatprep.subr.mxu0 0.0
        %868 = vmatpush1.xpose.msra.mxu0 0.0
        %869 = vmatprep.subr.mxu0 0.0
        %870 = vmatpush1.xpose.msra.mxu0 0.0
        %871 = vmatprep.subr.mxu0 0.0
        %872 = vmatpush1.xpose.msra.mxu0 0.0
        %873 = vmatprep.subr.mxu0 0.0
        %874 = vmatpush1.xpose.msra.mxu0 0.0
        %875 = vmatprep.subr.mxu0 0.0
        %876 = vmatpush1.xpose.msra.mxu0 0.0
        %877 = vmatprep.subr.mxu0 0.0
        %878 = vmatpush1.xpose.msra.mxu0 0.0
        %879 = vmatprep.subr.mxu0 0.0
        %880 = vmatpush1.xpose.msra.mxu0 0.0
        %881 = vmatprep.subr.mxu0 0.0
        %882 = vmatpush1.xpose.msra.mxu0 0.0
        %883 = vmatprep.subr.mxu0 0.0
        %884 = vmatpush1.xpose.msra.mxu0 0.0
        %885 = vmatprep.subr.mxu0 0.0
        %886 = vmatpush1.xpose.msra.mxu0 0.0
        %887 = vmatprep.subr.mxu0 0.0
        %888 = vmatpush1.xpose.msra.mxu0 %v855
        %889 = vmatprep.subr.mxu0 0.0
        %890 = vmatpush2.xpose.msra.mxu0 0.0
        %891 = vmatprep.subr.mxu0 0.0
        %892 = vmatpush2.xpose.msra.mxu0 0.0
        %893 = vmatprep.subr.mxu0 0.0
        %894 = vmatpush2.xpose.msra.mxu0 0.0
        %895 = vmatprep.subr.mxu0 0.0
        %896 = vmatpush2.xpose.msra.mxu0 0.0
        %897 = vmatprep.subr.mxu0 0.0
        %898 = vmatpush2.xpose.msra.mxu0 0.0
        %899 = vmatprep.subr.mxu0 0.0
        %900 = vmatpush2.xpose.msra.mxu0 0.0
        %901 = vmatprep.subr.mxu0 0.0
        %902 = vmatpush2.xpose.msra.mxu0 0.0
        %903 = vmatprep.subr.mxu0 0.0
        %904 = vmatpush2.xpose.msra.mxu0 0.0
        %905 = vmatprep.subr.mxu0 0.0
        %906 = vmatpush2.xpose.msra.mxu0 0.0
        %907 = vmatprep.subr.mxu0 0.0
        %908 = vmatpush2.xpose.msra.mxu0 0.0
        %909 = vmatprep.subr.mxu0 0.0
        %910 = vmatpush2.xpose.msra.mxu0 0.0
        %911 = vmatprep.subr.mxu0 0.0
        %912 = vmatpush2.xpose.msra.mxu0 0.0
        %913 = vmatprep.subr.mxu0 0.0
        %914 = vmatpush2.xpose.msra.mxu0 0.0
        %915 = vmatprep.subr.mxu0 0.0
        %916 = vmatpush2.xpose.msra.mxu0 0.0
        %917 = vmatprep.subr.mxu0 0.0
        %918 = vmatpush2.xpose.msra.mxu0 0.0
        %919 = vmatprep.subr.mxu0 0.0
        %920 = vmatpush2.xpose.msra.mxu0 0.0
        %921 = vmatprep.mubr.f32.mxu0 0.0
        %922 = vmatmul.mubr.f32.gmra.mxu0 %v852
        %v923 = vpop.f32.mrf.mxu0
        %v924 = vadd.f32 0.0, %v923
        %v925 = vpop.f32.mrf.mxu0
        %926 = vdwg.mxu0
        %v928 = vsel %vm850, %v544, 0
        %v931 = vsel %vm850, %v699, 0
        %933 = vmatprep.subr.mxu0 0.0
        %934 = vmatpush1.xpose.msra.mxu0 0.0
        %935 = vmatprep.subr.mxu0 0.0
        %936 = vmatpush1.xpose.msra.mxu0 0.0
        %937 = vmatprep.subr.mxu0 0.0
        %938 = vmatpush1.xpose.msra.mxu0 0.0
        %939 = vmatprep.subr.mxu0 0.0
        %940 = vmatpush1.xpose.msra.mxu0 0.0
        %941 = vmatprep.subr.mxu0 0.0
        %942 = vmatpush1.xpose.msra.mxu0 0.0
        %943 = vmatprep.subr.mxu0 0.0
        %944 = vmatpush1.xpose.msra.mxu0 0.0
        %945 = vmatprep.subr.mxu0 0.0
        %946 = vmatpush1.xpose.msra.mxu0 0.0
        %947 = vmatprep.subr.mxu0 0.0
        %948 = vmatpush1.xpose.msra.mxu0 0.0
        %949 = vmatprep.subr.mxu0 0.0
        %950 = vmatpush1.xpose.msra.mxu0 0.0
        %951 = vmatprep.subr.mxu0 0.0
        %952 = vmatpush1.xpose.msra.mxu0 0.0
        %953 = vmatprep.subr.mxu0 0.0
        %954 = vmatpush1.xpose.msra.mxu0 0.0
        %955 = vmatprep.subr.mxu0 0.0
        %956 = vmatpush1.xpose.msra.mxu0 0.0
        %957 = vmatprep.subr.mxu0 0.0
        %958 = vmatpush1.xpose.msra.mxu0 0.0
        %959 = vmatprep.subr.mxu0 0.0
        %960 = vmatpush1.xpose.msra.mxu0 0.0
        %961 = vmatprep.subr.mxu0 0.0
        %962 = vmatpush1.xpose.msra.mxu0 0.0
        %963 = vmatprep.subr.mxu0 0.0
        %964 = vmatpush1.xpose.msra.mxu0 %v931
        %965 = vmatprep.subr.mxu0 0.0
        %966 = vmatpush2.xpose.msra.mxu0 0.0
        %967 = vmatprep.subr.mxu0 0.0
        %968 = vmatpush2.xpose.msra.mxu0 0.0
        %969 = vmatprep.subr.mxu0 0.0
        %970 = vmatpush2.xpose.msra.mxu0 0.0
        %971 = vmatprep.subr.mxu0 0.0
        %972 = vmatpush2.xpose.msra.mxu0 0.0
        %973 = vmatprep.subr.mxu0 0.0
        %974 = vmatpush2.xpose.msra.mxu0 0.0
        %975 = vmatprep.subr.mxu0 0.0
        %976 = vmatpush2.xpose.msra.mxu0 0.0
        %977 = vmatprep.subr.mxu0 0.0
        %978 = vmatpush2.xpose.msra.mxu0 0.0
        %979 = vmatprep.subr.mxu0 0.0
        %980 = vmatpush2.xpose.msra.mxu0 0.0
        %981 = vmatprep.subr.mxu0 0.0
        %982 = vmatpush2.xpose.msra.mxu0 0.0
        %983 = vmatprep.subr.mxu0 0.0
        %984 = vmatpush2.xpose.msra.mxu0 0.0
        %985 = vmatprep.subr.mxu0 0.0
        %986 = vmatpush2.xpose.msra.mxu0 0.0
        %987 = vmatprep.subr.mxu0 0.0
        %988 = vmatpush2.xpose.msra.mxu0 0.0
        %989 = vmatprep.subr.mxu0 0.0
        %990 = vmatpush2.xpose.msra.mxu0 0.0
        %991 = vmatprep.subr.mxu0 0.0
        %992 = vmatpush2.xpose.msra.mxu0 0.0
        %993 = vmatprep.subr.mxu0 0.0
        %994 = vmatpush2.xpose.msra.mxu0 0.0
        %995 = vmatprep.subr.mxu0 0.0
        %996 = vmatpush2.xpose.msra.mxu0 0.0
        %997 = vmatprep.mubr.f32.mxu0 0.0
        %998 = vmatmul.mubr.f32.gmra.mxu0 %v928
        %v999 = vpop.f32.mrf.mxu0
        %v1000 = vadd.f32 0.0, %v999
        %v1001 = vpop.f32.mrf.mxu0
        %1002 = vdwg.mxu0
        %v1004 = vsel %vm850, %v545, 0
        %v1007 = vsel %vm850, %v700, 0
        %1009 = vmatprep.subr.mxu0 0.0
        %1010 = vmatpush1.xpose.msra.mxu0 0.0
        %1011 = vmatprep.subr.mxu0 0.0
        %1012 = vmatpush1.xpose.msra.mxu0 0.0
        %1013 = vmatprep.subr.mxu0 0.0
        %1014 = vmatpush1.xpose.msra.mxu0 0.0
        %1015 = vmatprep.subr.mxu0 0.0
        %1016 = vmatpush1.xpose.msra.mxu0 0.0
        %1017 = vmatprep.subr.mxu0 0.0
        %1018 = vmatpush1.xpose.msra.mxu0 0.0
        %1019 = vmatprep.subr.mxu0 0.0
        %1020 = vmatpush1.xpose.msra.mxu0 0.0
        %1021 = vmatprep.subr.mxu0 0.0
        %1022 = vmatpush1.xpose.msra.mxu0 0.0
        %1023 = vmatprep.subr.mxu0 0.0
        %1024 = vmatpush1.xpose.msra.mxu0 0.0
        %1025 = vmatprep.subr.mxu0 0.0
        %1026 = vmatpush1.xpose.msra.mxu0 0.0
        %1027 = vmatprep.subr.mxu0 0.0
        %1028 = vmatpush1.xpose.msra.mxu0 0.0
        %1029 = vmatprep.subr.mxu0 0.0
        %1030 = vmatpush1.xpose.msra.mxu0 0.0
        %1031 = vmatprep.subr.mxu0 0.0
        %1032 = vmatpush1.xpose.msra.mxu0 0.0
        %1033 = vmatprep.subr.mxu0 0.0
        %1034 = vmatpush1.xpose.msra.mxu0 0.0
        %1035 = vmatprep.subr.mxu0 0.0
        %1036 = vmatpush1.xpose.msra.mxu0 0.0
        %1037 = vmatprep.subr.mxu0 0.0
        %1038 = vmatpush1.xpose.msra.mxu0 0.0
        %1039 = vmatprep.subr.mxu0 0.0
        %1040 = vmatpush1.xpose.msra.mxu0 %v1007
        %1041 = vmatprep.subr.mxu0 0.0
        %1042 = vmatpush2.xpose.msra.mxu0 0.0
        %1043 = vmatprep.subr.mxu0 0.0
        %1044 = vmatpush2.xpose.msra.mxu0 0.0
        %1045 = vmatprep.subr.mxu0 0.0
        %1046 = vmatpush2.xpose.msra.mxu0 0.0
        %1047 = vmatprep.subr.mxu0 0.0
        %1048 = vmatpush2.xpose.msra.mxu0 0.0
        %1049 = vmatprep.subr.mxu0 0.0
        %1050 = vmatpush2.xpose.msra.mxu0 0.0
        %1051 = vmatprep.subr.mxu0 0.0
        %1052 = vmatpush2.xpose.msra.mxu0 0.0
        %1053 = vmatprep.subr.mxu0 0.0
        %1054 = vmatpush2.xpose.msra.mxu0 0.0
        %1055 = vmatprep.subr.mxu0 0.0
        %1056 = vmatpush2.xpose.msra.mxu0 0.0
        %1057 = vmatprep.subr.mxu0 0.0
        %1058 = vmatpush2.xpose.msra.mxu0 0.0
        %1059 = vmatprep.subr.mxu0 0.0
        %1060 = vmatpush2.xpose.msra.mxu0 0.0
        %1061 = vmatprep.subr.mxu0 0.0
        %1062 = vmatpush2.xpose.msra.mxu0 0.0
        %1063 = vmatprep.subr.mxu0 0.0
        %1064 = vmatpush2.xpose.msra.mxu0 0.0
        %1065 = vmatprep.subr.mxu0 0.0
        %1066 = vmatpush2.xpose.msra.mxu0 0.0
        %1067 = vmatprep.subr.mxu0 0.0
        %1068 = vmatpush2.xpose.msra.mxu0 0.0
        %1069 = vmatprep.subr.mxu0 0.0
        %1070 = vmatpush2.xpose.msra.mxu0 0.0
        %1071 = vmatprep.subr.mxu0 0.0
        %1072 = vmatpush2.xpose.msra.mxu0 0.0
        %1073 = vmatprep.mubr.f32.mxu0 0.0
        %1074 = vmatmul.mubr.f32.gmra.mxu0 %v1004
        %v1075 = vpop.f32.mrf.mxu0
        %v1076 = vadd.f32 0.0, %v1075
        %v1077 = vpop.f32.mrf.mxu0
        %1078 = vdwg.mxu0
        %v1080 = vsel %vm850, %v546, 0
        %v1083 = vsel %vm850, %v701, 0
        %1085 = vmatprep.subr.mxu0 0.0
        %1086 = vmatpush1.xpose.msra.mxu0 0.0
        %1087 = vmatprep.subr.mxu0 0.0
        %1088 = vmatpush1.xpose.msra.mxu0 0.0
        %1089 = vmatprep.subr.mxu0 0.0
        %1090 = vmatpush1.xpose.msra.mxu0 0.0
        %1091 = vmatprep.subr.mxu0 0.0
        %1092 = vmatpush1.xpose.msra.mxu0 0.0
        %1093 = vmatprep.subr.mxu0 0.0
        %1094 = vmatpush1.xpose.msra.mxu0 0.0
        %1095 = vmatprep.subr.mxu0 0.0
        %1096 = vmatpush1.xpose.msra.mxu0 0.0
        %1097 = vmatprep.subr.mxu0 0.0
        %1098 = vmatpush1.xpose.msra.mxu0 0.0
        %1099 = vmatprep.subr.mxu0 0.0
        %1100 = vmatpush1.xpose.msra.mxu0 0.0
        %1101 = vmatprep.subr.mxu0 0.0
        %1102 = vmatpush1.xpose.msra.mxu0 0.0
        %1103 = vmatprep.subr.mxu0 0.0
        %1104 = vmatpush1.xpose.msra.mxu0 0.0
        %1105 = vmatprep.subr.mxu0 0.0
        %1106 = vmatpush1.xpose.msra.mxu0 0.0
        %1107 = vmatprep.subr.mxu0 0.0
        %1108 = vmatpush1.xpose.msra.mxu0 0.0
        %1109 = vmatprep.subr.mxu0 0.0
        %1110 = vmatpush1.xpose.msra.mxu0 0.0
        %1111 = vmatprep.subr.mxu0 0.0
        %1112 = vmatpush1.xpose.msra.mxu0 0.0
        %1113 = vmatprep.subr.mxu0 0.0
        %1114 = vmatpush1.xpose.msra.mxu0 0.0
        %1115 = vmatprep.subr.mxu0 0.0
        %1116 = vmatpush1.xpose.msra.mxu0 %v1083
        %1117 = vmatprep.subr.mxu0 0.0
        %1118 = vmatpush2.xpose.msra.mxu0 0.0
        %1119 = vmatprep.subr.mxu0 0.0
        %1120 = vmatpush2.xpose.msra.mxu0 0.0
        %1121 = vmatprep.subr.mxu0 0.0
        %1122 = vmatpush2.xpose.msra.mxu0 0.0
        %1123 = vmatprep.subr.mxu0 0.0
        %1124 = vmatpush2.xpose.msra.mxu0 0.0
        %1125 = vmatprep.subr.mxu0 0.0
        %1126 = vmatpush2.xpose.msra.mxu0 0.0
        %1127 = vmatprep.subr.mxu0 0.0
        %1128 = vmatpush2.xpose.msra.mxu0 0.0
        %1129 = vmatprep.subr.mxu0 0.0
        %1130 = vmatpush2.xpose.msra.mxu0 0.0
        %1131 = vmatprep.subr.mxu0 0.0
        %1132 = vmatpush2.xpose.msra.mxu0 0.0
        %1133 = vmatprep.subr.mxu0 0.0
        %1134 = vmatpush2.xpose.msra.mxu0 0.0
        %1135 = vmatprep.subr.mxu0 0.0
        %1136 = vmatpush2.xpose.msra.mxu0 0.0
        %1137 = vmatprep.subr.mxu0 0.0
        %1138 = vmatpush2.xpose.msra.mxu0 0.0
        %1139 = vmatprep.subr.mxu0 0.0
        %1140 = vmatpush2.xpose.msra.mxu0 0.0
        %1141 = vmatprep.subr.mxu0 0.0
        %1142 = vmatpush2.xpose.msra.mxu0 0.0
        %1143 = vmatprep.subr.mxu0 0.0
        %1144 = vmatpush2.xpose.msra.mxu0 0.0
        %1145 = vmatprep.subr.mxu0 0.0
        %1146 = vmatpush2.xpose.msra.mxu0 0.0
        %1147 = vmatprep.subr.mxu0 0.0
        %1148 = vmatpush2.xpose.msra.mxu0 0.0
        %1149 = vmatprep.mubr.f32.mxu0 0.0
        %1150 = vmatmul.mubr.f32.gmra.mxu0 %v1080
        %v1151 = vpop.f32.mrf.mxu0
        %v1152 = vadd.f32 0.0, %v1151
        %v1153 = vpop.f32.mrf.mxu0
        %1154 = vdwg.mxu0
        %v1155 = vsel %vm850, %v924, -inf
        %1156 = vmax.xlane.f32.xlu0 %v1155
        %v1157 = vpop.xlane.xlu0 %1156
        %v1158 = vsel %vm850, %v1000, -inf
        %1159 = vmax.xlane.f32.xlu0 %v1158
        %v1160 = vpop.xlane.xlu0 %1159
        %v1161 = vsel %vm850, %v1076, -inf
        %1162 = vmax.xlane.f32.xlu0 %v1161
        %v1163 = vpop.xlane.xlu0 %1162
        %v1164 = vsel %vm850, %v1152, -inf
        %1165 = vmax.xlane.f32.xlu0 %v1164
        %v1166 = vpop.xlane.xlu0 %1165
        %v1167 = vsub.f32 %v924, %v1157
        %v1168 = vsub.f32 %v1000, %v1160
        %v1169 = vsub.f32 %v1076, %v1163
        %v1170 = vsub.f32 %v1152, %v1166
        %v1171 = vmul.f32 %v1167, 1.442695
        %v1172 = vpow.pop %v1171
        %v1173 = vmul.f32 %v1168, 1.442695
        %v1174 = vpow.pop %v1173
        %v1175 = vmul.f32 %v1169, 1.442695
        %v1176 = vpow.pop %v1175
        %v1177 = vmul.f32 %v1170, 1.442695
        %v1178 = vpow.pop %v1177
        %v1179 = vsel %vm850, %v1172, 0.0
        %1180 = vadd.xlane.f32.xlu0 %v1179
        %v1181 = vpop.xlane.xlu0 %1180
        %v1182 = vsel %vm850, %v1174, 0.0
        %1183 = vadd.xlane.f32.xlu0 %v1182
        %v1184 = vpop.xlane.xlu0 %1183
        %v1185 = vsel %vm850, %v1176, 0.0
        %1186 = vadd.xlane.f32.xlu0 %v1185
        %v1187 = vpop.xlane.xlu0 %1186
        %v1188 = vsel %vm850, %v1178, 0.0
        %1189 = vadd.xlane.f32.xlu0 %v1188
        %v1190 = vpop.xlane.xlu0 %1189
        %v1191 = vrcp.pop %v1181
        %v1192 = vmul.f32 %v1172, %v1191
        %v1193 = vrcp.pop %v1184
        %v1194 = vmul.f32 %v1174, %v1193
        %v1195 = vrcp.pop %v1187
        %v1196 = vmul.f32 %v1176, %v1195
        %v1197 = vrcp.pop %v1190
        %v1198 = vmul.f32 %v1178, %v1197
        %v1200 = vsel %vm850, %v1192, 0
        %1202 = vmatprep.subr.mxu0 0.0
        %1203 = vmatpush1.msra.mxu0 0.0
        %1204 = vmatprep.subr.mxu0 0.0
        %1205 = vmatpush1.msra.mxu0 0.0
        %1206 = vmatprep.subr.mxu0 0.0
        %1207 = vmatpush1.msra.mxu0 0.0
        %1208 = vmatprep.subr.mxu0 0.0
        %1209 = vmatpush1.msra.mxu0 0.0
        %1210 = vmatprep.subr.mxu0 0.0
        %1211 = vmatpush1.msra.mxu0 0.0
        %1212 = vmatprep.subr.mxu0 0.0
        %1213 = vmatpush1.msra.mxu0 0.0
        %1214 = vmatprep.subr.mxu0 0.0
        %1215 = vmatpush1.msra.mxu0 0.0
        %1216 = vmatprep.subr.mxu0 0.0
        %1217 = vmatpush1.msra.mxu0 0.0
        %1218 = vmatprep.subr.mxu0 0.0
        %1219 = vmatpush1.msra.mxu0 0.0
        %1220 = vmatprep.subr.mxu0 0.0
        %1221 = vmatpush1.msra.mxu0 0.0
        %1222 = vmatprep.subr.mxu0 0.0
        %1223 = vmatpush1.msra.mxu0 0.0
        %1224 = vmatprep.subr.mxu0 0.0
        %1225 = vmatpush1.msra.mxu0 0.0
        %1226 = vmatprep.subr.mxu0 0.0
        %1227 = vmatpush1.msra.mxu0 0.0
        %1228 = vmatprep.subr.mxu0 0.0
        %1229 = vmatpush1.msra.mxu0 0.0
        %1230 = vmatprep.subr.mxu0 0.0
        %1231 = vmatpush1.msra.mxu0 0.0
        %1232 = vmatprep.subr.mxu0 0.0
        %1233 = vmatpush1.msra.mxu0 %v846
        %1234 = vmatprep.subr.mxu0 0.0
        %1235 = vmatpush2.msra.mxu0 0.0
        %1236 = vmatprep.subr.mxu0 0.0
        %1237 = vmatpush2.msra.mxu0 0.0
        %1238 = vmatprep.subr.mxu0 0.0
        %1239 = vmatpush2.msra.mxu0 0.0
        %1240 = vmatprep.subr.mxu0 0.0
        %1241 = vmatpush2.msra.mxu0 0.0
        %1242 = vmatprep.subr.mxu0 0.0
        %1243 = vmatpush2.msra.mxu0 0.0
        %1244 = vmatprep.subr.mxu0 0.0
        %1245 = vmatpush2.msra.mxu0 0.0
        %1246 = vmatprep.subr.mxu0 0.0
        %1247 = vmatpush2.msra.mxu0 0.0
        %1248 = vmatprep.subr.mxu0 0.0
        %1249 = vmatpush2.msra.mxu0 0.0
        %1250 = vmatprep.subr.mxu0 0.0
        %1251 = vmatpush2.msra.mxu0 0.0
        %1252 = vmatprep.subr.mxu0 0.0
        %1253 = vmatpush2.msra.mxu0 0.0
        %1254 = vmatprep.subr.mxu0 0.0
        %1255 = vmatpush2.msra.mxu0 0.0
        %1256 = vmatprep.subr.mxu0 0.0
        %1257 = vmatpush2.msra.mxu0 0.0
        %1258 = vmatprep.subr.mxu0 0.0
        %1259 = vmatpush2.msra.mxu0 0.0
        %1260 = vmatprep.subr.mxu0 0.0
        %1261 = vmatpush2.msra.mxu0 0.0
        %1262 = vmatprep.subr.mxu0 0.0
        %1263 = vmatpush2.msra.mxu0 0.0
        %1264 = vmatprep.subr.mxu0 0.0
        %1265 = vmatpush2.msra.mxu0 0.0
        %1266 = vmatprep.mubr.f32.mxu0 0.0
        %1267 = vmatmul.mubr.f32.gmra.mxu0 %v1200
        %v1268 = vpop.f32.mrf.mxu0
        %v1269 = vadd.f32 0.0, %v1268
        %v1270 = vpop.f32.mrf.mxu0
        %1271 = vdwg.mxu0
        %v1273 = vsel %vm850, %v1194, 0
        %1275 = vmatprep.subr.mxu0 0.0
        %1276 = vmatpush1.msra.mxu0 0.0
        %1277 = vmatprep.subr.mxu0 0.0
        %1278 = vmatpush1.msra.mxu0 0.0
        %1279 = vmatprep.subr.mxu0 0.0
        %1280 = vmatpush1.msra.mxu0 0.0
        %1281 = vmatprep.subr.mxu0 0.0
        %1282 = vmatpush1.msra.mxu0 0.0
        %1283 = vmatprep.subr.mxu0 0.0
        %1284 = vmatpush1.msra.mxu0 0.0
        %1285 = vmatprep.subr.mxu0 0.0
        %1286 = vmatpush1.msra.mxu0 0.0
        %1287 = vmatprep.subr.mxu0 0.0
        %1288 = vmatpush1.msra.mxu0 0.0
        %1289 = vmatprep.subr.mxu0 0.0
        %1290 = vmatpush1.msra.mxu0 0.0
        %1291 = vmatprep.subr.mxu0 0.0
        %1292 = vmatpush1.msra.mxu0 0.0
        %1293 = vmatprep.subr.mxu0 0.0
        %1294 = vmatpush1.msra.mxu0 0.0
        %1295 = vmatprep.subr.mxu0 0.0
        %1296 = vmatpush1.msra.mxu0 0.0
        %1297 = vmatprep.subr.mxu0 0.0
        %1298 = vmatpush1.msra.mxu0 0.0
        %1299 = vmatprep.subr.mxu0 0.0
        %1300 = vmatpush1.msra.mxu0 0.0
        %1301 = vmatprep.subr.mxu0 0.0
        %1302 = vmatpush1.msra.mxu0 0.0
        %1303 = vmatprep.subr.mxu0 0.0
        %1304 = vmatpush1.msra.mxu0 0.0
        %1305 = vmatprep.subr.mxu0 0.0
        %1306 = vmatpush1.msra.mxu0 %v847
        %1307 = vmatprep.subr.mxu0 0.0
        %1308 = vmatpush2.msra.mxu0 0.0
        %1309 = vmatprep.subr.mxu0 0.0
        %1310 = vmatpush2.msra.mxu0 0.0
        %1311 = vmatprep.subr.mxu0 0.0
        %1312 = vmatpush2.msra.mxu0 0.0
        %1313 = vmatprep.subr.mxu0 0.0
        %1314 = vmatpush2.msra.mxu0 0.0
        %1315 = vmatprep.subr.mxu0 0.0
        %1316 = vmatpush2.msra.mxu0 0.0
        %1317 = vmatprep.subr.mxu0 0.0
        %1318 = vmatpush2.msra.mxu0 0.0
        %1319 = vmatprep.subr.mxu0 0.0
        %1320 = vmatpush2.msra.mxu0 0.0
        %1321 = vmatprep.subr.mxu0 0.0
        %1322 = vmatpush2.msra.mxu0 0.0
        %1323 = vmatprep.subr.mxu0 0.0
        %1324 = vmatpush2.msra.mxu0 0.0
        %1325 = vmatprep.subr.mxu0 0.0
        %1326 = vmatpush2.msra.mxu0 0.0
        %1327 = vmatprep.subr.mxu0 0.0
        %1328 = vmatpush2.msra.mxu0 0.0
        %1329 = vmatprep.subr.mxu0 0.0
        %1330 = vmatpush2.msra.mxu0 0.0
        %1331 = vmatprep.subr.mxu0 0.0
        %1332 = vmatpush2.msra.mxu0 0.0
        %1333 = vmatprep.subr.mxu0 0.0
        %1334 = vmatpush2.msra.mxu0 0.0
        %1335 = vmatprep.subr.mxu0 0.0
        %1336 = vmatpush2.msra.mxu0 0.0
        %1337 = vmatprep.subr.mxu0 0.0
        %1338 = vmatpush2.msra.mxu0 0.0
        %1339 = vmatprep.mubr.f32.mxu0 0.0
        %1340 = vmatmul.mubr.f32.gmra.mxu0 %v1273
        %v1341 = vpop.f32.mrf.mxu0
        %v1342 = vadd.f32 0.0, %v1341
        %v1343 = vpop.f32.mrf.mxu0
        %1344 = vdwg.mxu0
        %v1346 = vsel %vm850, %v1196, 0
        %1348 = vmatprep.subr.mxu0 0.0
        %1349 = vmatpush1.msra.mxu0 0.0
        %1350 = vmatprep.subr.mxu0 0.0
        %1351 = vmatpush1.msra.mxu0 0.0
        %1352 = vmatprep.subr.mxu0 0.0
        %1353 = vmatpush1.msra.mxu0 0.0
        %1354 = vmatprep.subr.mxu0 0.0
        %1355 = vmatpush1.msra.mxu0 0.0
        %1356 = vmatprep.subr.mxu0 0.0
        %1357 = vmatpush1.msra.mxu0 0.0
        %1358 = vmatprep.subr.mxu0 0.0
        %1359 = vmatpush1.msra.mxu0 0.0
        %1360 = vmatprep.subr.mxu0 0.0
        %1361 = vmatpush1.msra.mxu0 0.0
        %1362 = vmatprep.subr.mxu0 0.0
        %1363 = vmatpush1.msra.mxu0 0.0
        %1364 = vmatprep.subr.mxu0 0.0
        %1365 = vmatpush1.msra.mxu0 0.0
        %1366 = vmatprep.subr.mxu0 0.0
        %1367 = vmatpush1.msra.mxu0 0.0
        %1368 = vmatprep.subr.mxu0 0.0
        %1369 = vmatpush1.msra.mxu0 0.0
        %1370 = vmatprep.subr.mxu0 0.0
        %1371 = vmatpush1.msra.mxu0 0.0
        %1372 = vmatprep.subr.mxu0 0.0
        %1373 = vmatpush1.msra.mxu0 0.0
        %1374 = vmatprep.subr.mxu0 0.0
        %1375 = vmatpush1.msra.mxu0 0.0
        %1376 = vmatprep.subr.mxu0 0.0
        %1377 = vmatpush1.msra.mxu0 0.0
        %1378 = vmatprep.subr.mxu0 0.0
        %1379 = vmatpush1.msra.mxu0 %v848
        %1380 = vmatprep.subr.mxu0 0.0
        %1381 = vmatpush2.msra.mxu0 0.0
        %1382 = vmatprep.subr.mxu0 0.0
        %1383 = vmatpush2.msra.mxu0 0.0
        %1384 = vmatprep.subr.mxu0 0.0
        %1385 = vmatpush2.msra.mxu0 0.0
        %1386 = vmatprep.subr.mxu0 0.0
        %1387 = vmatpush2.msra.mxu0 0.0
        %1388 = vmatprep.subr.mxu0 0.0
        %1389 = vmatpush2.msra.mxu0 0.0
        %1390 = vmatprep.subr.mxu0 0.0
        %1391 = vmatpush2.msra.mxu0 0.0
        %1392 = vmatprep.subr.mxu0 0.0
        %1393 = vmatpush2.msra.mxu0 0.0
        %1394 = vmatprep.subr.mxu0 0.0
        %1395 = vmatpush2.msra.mxu0 0.0
        %1396 = vmatprep.subr.mxu0 0.0
        %1397 = vmatpush2.msra.mxu0 0.0
        %1398 = vmatprep.subr.mxu0 0.0
        %1399 = vmatpush2.msra.mxu0 0.0
        %1400 = vmatprep.subr.mxu0 0.0
        %1401 = vmatpush2.msra.mxu0 0.0
        %1402 = vmatprep.subr.mxu0 0.0
        %1403 = vmatpush2.msra.mxu0 0.0
        %1404 = vmatprep.subr.mxu0 0.0
        %1405 = vmatpush2.msra.mxu0 0.0
        %1406 = vmatprep.subr.mxu0 0.0
        %1407 = vmatpush2.msra.mxu0 0.0
        %1408 = vmatprep.subr.mxu0 0.0
        %1409 = vmatpush2.msra.mxu0 0.0
        %1410 = vmatprep.subr.mxu0 0.0
        %1411 = vmatpush2.msra.mxu0 0.0
        %1412 = vmatprep.mubr.f32.mxu0 0.0
        %1413 = vmatmul.mubr.f32.gmra.mxu0 %v1346
        %v1414 = vpop.f32.mrf.mxu0
        %v1415 = vadd.f32 0.0, %v1414
        %v1416 = vpop.f32.mrf.mxu0
        %1417 = vdwg.mxu0
        %v1419 = vsel %vm850, %v1198, 0
        %1421 = vmatprep.subr.mxu0 0.0
        %1422 = vmatpush1.msra.mxu0 0.0
        %1423 = vmatprep.subr.mxu0 0.0
        %1424 = vmatpush1.msra.mxu0 0.0
        %1425 = vmatprep.subr.mxu0 0.0
        %1426 = vmatpush1.msra.mxu0 0.0
        %1427 = vmatprep.subr.mxu0 0.0
        %1428 = vmatpush1.msra.mxu0 0.0
        %1429 = vmatprep.subr.mxu0 0.0
        %1430 = vmatpush1.msra.mxu0 0.0
        %1431 = vmatprep.subr.mxu0 0.0
        %1432 = vmatpush1.msra.mxu0 0.0
        %1433 = vmatprep.subr.mxu0 0.0
        %1434 = vmatpush1.msra.mxu0 0.0
        %1435 = vmatprep.subr.mxu0 0.0
        %1436 = vmatpush1.msra.mxu0 0.0
        %1437 = vmatprep.subr.mxu0 0.0
        %1438 = vmatpush1.msra.mxu0 0.0
        %1439 = vmatprep.subr.mxu0 0.0
        %1440 = vmatpush1.msra.mxu0 0.0
        %1441 = vmatprep.subr.mxu0 0.0
        %1442 = vmatpush1.msra.mxu0 0.0
        %1443 = vmatprep.subr.mxu0 0.0
        %1444 = vmatpush1.msra.mxu0 0.0
        %1445 = vmatprep.subr.mxu0 0.0
        %1446 = vmatpush1.msra.mxu0 0.0
        %1447 = vmatprep.subr.mxu0 0.0
        %1448 = vmatpush1.msra.mxu0 0.0
        %1449 = vmatprep.subr.mxu0 0.0
        %1450 = vmatpush1.msra.mxu0 0.0
        %1451 = vmatprep.subr.mxu0 0.0
        %1452 = vmatpush1.msra.mxu0 %v849
        %1453 = vmatprep.subr.mxu0 0.0
        %1454 = vmatpush2.msra.mxu0 0.0
        %1455 = vmatprep.subr.mxu0 0.0
        %1456 = vmatpush2.msra.mxu0 0.0
        %1457 = vmatprep.subr.mxu0 0.0
        %1458 = vmatpush2.msra.mxu0 0.0
        %1459 = vmatprep.subr.mxu0 0.0
        %1460 = vmatpush2.msra.mxu0 0.0
        %1461 = vmatprep.subr.mxu0 0.0
        %1462 = vmatpush2.msra.mxu0 0.0
        %1463 = vmatprep.subr.mxu0 0.0
        %1464 = vmatpush2.msra.mxu0 0.0
        %1465 = vmatprep.subr.mxu0 0.0
        %1466 = vmatpush2.msra.mxu0 0.0
        %1467 = vmatprep.subr.mxu0 0.0
        %1468 = vmatpush2.msra.mxu0 0.0
        %1469 = vmatprep.subr.mxu0 0.0
        %1470 = vmatpush2.msra.mxu0 0.0
        %1471 = vmatprep.subr.mxu0 0.0
        %1472 = vmatpush2.msra.mxu0 0.0
        %1473 = vmatprep.subr.mxu0 0.0
        %1474 = vmatpush2.msra.mxu0 0.0
        %1475 = vmatprep.subr.mxu0 0.0
        %1476 = vmatpush2.msra.mxu0 0.0
        %1477 = vmatprep.subr.mxu0 0.0
        %1478 = vmatpush2.msra.mxu0 0.0
        %1479 = vmatprep.subr.mxu0 0.0
        %1480 = vmatpush2.msra.mxu0 0.0
        %1481 = vmatprep.subr.mxu0 0.0
        %1482 = vmatpush2.msra.mxu0 0.0
        %1483 = vmatprep.subr.mxu0 0.0
        %1484 = vmatpush2.msra.mxu0 0.0
        %1485 = vmatprep.mubr.f32.mxu0 0.0
        %1486 = vmatmul.mubr.f32.gmra.mxu0 %v1419
        %v1487 = vpop.f32.mrf.mxu0
        %v1488 = vadd.f32 0.0, %v1487
        %v1489 = vpop.f32.mrf.mxu0
        %1490 = vdwg.mxu0
        %v1491 = vcombine.low %v1269, %v1415
        %v1492 = vcombine.high %v1269, %v1415
        %v1494 = vunpack.c.l.s4 1983009808
        %v1495 = vunpack.c.0.s8 %v1494
        %v1496 = vlaneseq
        %v1497 = vshrl.u32 %v1496, 7
        %v1498 = vsub.s32 %v1495, %v1497
        %v1499 = vrot.slane %v1491, %v1498
        %v1501 = vunpack.c.l.s4 1983009808
        %v1502 = vunpack.c.0.s8 %v1501
        %v1503 = vlaneseq
        %v1504 = vshrl.u32 %v1503, 7
        %v1505 = vsub.s32 %v1502, %v1504
        %v1506 = vrot.slane %v1492, %v1505
        %v1507 = vcombine.low %v1342, %v1488
        %v1508 = vcombine.high %v1342, %v1488
        %v1510 = vunpack.c.l.s4 1983009808
        %v1511 = vunpack.c.0.s8 %v1510
        %v1512 = vlaneseq
        %v1513 = vshrl.u32 %v1512, 7
        %v1514 = vsub.s32 %v1511, %v1513
        %v1515 = vrot.slane %v1507, %v1514
        %v1517 = vunpack.c.l.s4 1983009808
        %v1518 = vunpack.c.0.s8 %v1517
        %v1519 = vlaneseq
        %v1520 = vshrl.u32 %v1519, 7
        %v1521 = vsub.s32 %v1518, %v1520
        %v1522 = vrot.slane %v1508, %v1521
        %v1523 = vcombine.low %v1499, %v1515
        %v1524 = vcombine.high %v1499, %v1515
        %v1526 = vunpack.c.l.s4 1934713408
        %v1527 = vunpack.c.0.s8 %v1526
        %v1528 = vlaneseq
        %v1529 = vshrl.u32 %v1528, 7
        %v1530 = vsub.s32 %v1527, %v1529
        %v1531 = vrot.slane %v1523, %v1530
        %v1533 = vunpack.c.l.s4 1934713408
        %v1534 = vunpack.c.0.s8 %v1533
        %v1535 = vlaneseq
        %v1536 = vshrl.u32 %v1535, 7
        %v1537 = vsub.s32 %v1534, %v1536
        %v1538 = vrot.slane %v1524, %v1537
        %v1539 = vcombine.low %v1506, %v1522
        %v1540 = vcombine.high %v1506, %v1522
        %v1542 = vunpack.c.l.s4 1934713408
        %v1543 = vunpack.c.0.s8 %v1542
        %v1544 = vlaneseq
        %v1545 = vshrl.u32 %v1544, 7
        %v1546 = vsub.s32 %v1543, %v1545
        %v1547 = vrot.slane %v1539, %v1546
        %v1549 = vunpack.c.l.s4 1934713408
        %v1550 = vunpack.c.0.s8 %v1549
        %v1551 = vlaneseq
        %v1552 = vshrl.u32 %v1551, 7
        %v1553 = vsub.s32 %v1550, %v1552
        %v1554 = vrot.slane %v1540, %v1553
        %v1555 = vcombine.high %v1531, 0.0
        %v1556 = vcombine.high %v1538, 0.0
        %v1557 = vcombine.high %v1547, 0.0
        %v1558 = vcombine.high %v1554, 0.0
        %v1559 = vcombine.low %v1531, %v1538
        %v1561 = vunpack.c.l.s4 1983009808
        %v1562 = vunpack.c.0.s8 %v1561
        %v1563 = vlaneseq
        %v1564 = vshrl.u32 %v1563, 7
        %v1565 = vsub.s32 %v1562, %v1564
        %v1566 = vrot.slane %v1559, %v1565
        %v1567 = vcombine.low %v1555, %v1556
        %v1569 = vunpack.c.l.s4 1983009808
        %v1570 = vunpack.c.0.s8 %v1569
        %v1571 = vlaneseq
        %v1572 = vshrl.u32 %v1571, 7
        %v1573 = vsub.s32 %v1570, %v1572
        %v1574 = vrot.slane %v1567, %v1573
        %v1575 = vcombine.low %v1547, %v1554
        %v1577 = vunpack.c.l.s4 1983009808
        %v1578 = vunpack.c.0.s8 %v1577
        %v1579 = vlaneseq
        %v1580 = vshrl.u32 %v1579, 7
        %v1581 = vsub.s32 %v1578, %v1580
        %v1582 = vrot.slane %v1575, %v1581
        %v1583 = vcombine.low %v1557, %v1558
        %v1585 = vunpack.c.l.s4 1983009808
        %v1586 = vunpack.c.0.s8 %v1585
        %v1587 = vlaneseq
        %v1588 = vshrl.u32 %v1587, 7
        %v1589 = vsub.s32 %v1586, %v1588
        %v1590 = vrot.slane %v1583, %v1589
        %v1591 = vcombine.low %v1566, %v1574
        %v1592 = vcombine.high %v1566, %v1574
        %v1594 = vunpack.c.l.s4 1934713408
        %v1595 = vunpack.c.0.s8 %v1594
        %v1596 = vlaneseq
        %v1597 = vshrl.u32 %v1596, 7
        %v1598 = vsub.s32 %v1595, %v1597
        %v1599 = vrot.slane %v1591, %v1598
        %v1601 = vunpack.c.l.s4 1934713408
        %v1602 = vunpack.c.0.s8 %v1601
        %v1603 = vlaneseq
        %v1604 = vshrl.u32 %v1603, 7
        %v1605 = vsub.s32 %v1602, %v1604
        %v1606 = vrot.slane %v1592, %v1605
        %v1607 = vcombine.low %v1582, %v1590
        %v1608 = vcombine.high %v1582, %v1590
        %v1610 = vunpack.c.l.s4 1934713408
        %v1611 = vunpack.c.0.s8 %v1610
        %v1612 = vlaneseq
        %v1613 = vshrl.u32 %v1612, 7
        %v1614 = vsub.s32 %v1611, %v1613
        %v1615 = vrot.slane %v1607, %v1614
        %v1617 = vunpack.c.l.s4 1934713408
        %v1618 = vunpack.c.0.s8 %v1617
        %v1619 = vlaneseq
        %v1620 = vshrl.u32 %v1619, 7
        %v1621 = vsub.s32 %v1618, %v1620
        %v1622 = vrot.slane %v1608, %v1621
        %v1623 = vcombine.low %v1599, %v1615
        %v1624 = vcombine.high %v1599, %v1615
        %v1625 = vcombine.low %v1606, %v1622
        %v1626 = vcombine.high %v1606, %v1622
        %1628 = vrot.lane.b32.xlu0 %v1624, 8
        %v1629 = vpop.permute.xlu0 %1628
        %1632 = vrot.lane.b32.xlu0 %v1625, 16
        %v1633 = vpop.permute.xlu0 %1632
        %1636 = vrot.lane.b32.xlu0 %v1626, 24
        %v1637 = vpop.permute.xlu0 %1636
        %v1639 = vsel %vm850, %v1623, %v1629
        %vm1640 = vcmask 130048
        %v1641 = vsel %vm1640, %v1639, %v1633
        %vm1642 = vcmask 195584
        %v1643 = vsel %vm1642, %v1641, %v1637
        %v1644 = vld [vmem:[%s2] sm:$0xff]
        %v1645 = vld [vmem:[%s2 + $0x8] sm:$0xff]
        %v1646 = vld [vmem:[%s2 + $0x10] sm:$0xff]
        %v1647 = vld [vmem:[%s2 + $0x18] sm:$0xff]
        %v1648 = vld [vmem:[%s3] sm:$0x1]
        %v1650 = vlaneseq
        %v1651 = vshrl.u32 %v1650, 7
        %v1652 = vsub.s32 0, %v1651
        %v1653 = vrot.slane %v1648, %v1652
        %v1656 = vsel %vm326, %v1643, 0
        %1658 = vmatprep.subr.mxu0 0.0
        %1659 = vmatpush1.msra.mxu0 0.0
        %1660 = vmatprep.subr.mxu0 0.0
        %1661 = vmatpush1.msra.mxu0 0.0
        %1662 = vmatprep.subr.mxu0 0.0
        %1663 = vmatpush1.msra.mxu0 0.0
        %1664 = vmatprep.subr.mxu0 0.0
        %1665 = vmatpush1.msra.mxu0 0.0
        %1666 = vmatprep.subr.mxu0 0.0
        %1667 = vmatpush1.msra.mxu0 0.0
        %1668 = vmatprep.subr.mxu0 0.0
        %1669 = vmatpush1.msra.mxu0 0.0
        %1670 = vmatprep.subr.mxu0 0.0
        %1671 = vmatpush1.msra.mxu0 0.0
        %1672 = vmatprep.subr.mxu0 0.0
        %1673 = vmatpush1.msra.mxu0 0.0
        %1674 = vmatprep.subr.mxu0 0.0
        %1675 = vmatpush1.msra.mxu0 0.0
        %1676 = vmatprep.subr.mxu0 0.0
        %1677 = vmatpush1.msra.mxu0 0.0
        %1678 = vmatprep.subr.mxu0 0.0
        %1679 = vmatpush1.msra.mxu0 0.0
        %1680 = vmatprep.subr.mxu0 0.0
        %1681 = vmatpush1.msra.mxu0 0.0
        %1682 = vmatprep.subr.mxu0 0.0
        %1683 = vmatpush1.msra.mxu0 %v1647
        %1684 = vmatprep.subr.mxu0 0.0
        %1685 = vmatpush1.msra.mxu0 %v1646
        %1686 = vmatprep.subr.mxu0 0.0
        %1687 = vmatpush1.msra.mxu0 %v1645
        %1688 = vmatprep.subr.mxu0 0.0
        %1689 = vmatpush1.msra.mxu0 %v1644
        %1690 = vmatprep.subr.mxu0 0.0
        %1691 = vmatpush2.msra.mxu0 0.0
        %1692 = vmatprep.subr.mxu0 0.0
        %1693 = vmatpush2.msra.mxu0 0.0
        %1694 = vmatprep.subr.mxu0 0.0
        %1695 = vmatpush2.msra.mxu0 0.0
        %1696 = vmatprep.subr.mxu0 0.0
        %1697 = vmatpush2.msra.mxu0 0.0
        %1698 = vmatprep.subr.mxu0 0.0
        %1699 = vmatpush2.msra.mxu0 0.0
        %1700 = vmatprep.subr.mxu0 0.0
        %1701 = vmatpush2.msra.mxu0 0.0
        %1702 = vmatprep.subr.mxu0 0.0
        %1703 = vmatpush2.msra.mxu0 0.0
        %1704 = vmatprep.subr.mxu0 0.0
        %1705 = vmatpush2.msra.mxu0 0.0
        %1706 = vmatprep.subr.mxu0 0.0
        %1707 = vmatpush2.msra.mxu0 0.0
        %1708 = vmatprep.subr.mxu0 0.0
        %1709 = vmatpush2.msra.mxu0 0.0
        %1710 = vmatprep.subr.mxu0 0.0
        %1711 = vmatpush2.msra.mxu0 0.0
        %1712 = vmatprep.subr.mxu0 0.0
        %1713 = vmatpush2.msra.mxu0 0.0
        %1714 = vmatprep.subr.mxu0 0.0
        %1715 = vmatpush2.msra.mxu0 0.0
        %1716 = vmatprep.subr.mxu0 0.0
        %1717 = vmatpush2.msra.mxu0 0.0
        %1718 = vmatprep.subr.mxu0 0.0
        %1719 = vmatpush2.msra.mxu0 0.0
        %1720 = vmatprep.subr.mxu0 0.0
        %1721 = vmatpush2.msra.mxu0 0.0
        %1722 = vmatprep.mubr.f32.mxu0 0.0
        %1723 = vmatmul.mubr.f32.gmra.mxu0 %v1656
        %v1724 = vpop.f32.mrf.mxu0
        %v1725 = vadd.f32 %v1653, %v1724
        %v1726 = vpop.f32.mrf.mxu0
        %1727 = vdwg.mxu0
        %v1728 = vadd.f32 %v321, %v1725
        %v1729 = vld [vmem:[%s4] sm:$0xff]
        %v1730 = vld [vmem:[%s4 + $0x8] sm:$0xff]
        %v1731 = vld [vmem:[%s4 + $0x10] sm:$0xff]
        %v1732 = vld [vmem:[%s4 + $0x18] sm:$0xff]
        %v1733 = vld [vmem:[%s5] sm:$0x1]
        %v1735 = vlaneseq
        %v1736 = vshrl.u32 %v1735, 7
        %v1737 = vsub.s32 0, %v1736
        %v1738 = vrot.slane %v1733, %v1737
        %v1741 = vsel %vm326, %v1728, 0
        %1743 = vmatprep.subr.mxu0 0.0
        %1744 = vmatpush1.msra.mxu0 0.0
        %1745 = vmatprep.subr.mxu0 0.0
        %1746 = vmatpush1.msra.mxu0 0.0
        %1747 = vmatprep.subr.mxu0 0.0
        %1748 = vmatpush1.msra.mxu0 0.0
        %1749 = vmatprep.subr.mxu0 0.0
        %1750 = vmatpush1.msra.mxu0 0.0
        %1751 = vmatprep.subr.mxu0 0.0
        %1752 = vmatpush1.msra.mxu0 0.0
        %1753 = vmatprep.subr.mxu0 0.0
        %1754 = vmatpush1.msra.mxu0 0.0
        %1755 = vmatprep.subr.mxu0 0.0
        %1756 = vmatpush1.msra.mxu0 0.0
        %1757 = vmatprep.subr.mxu0 0.0
        %1758 = vmatpush1.msra.mxu0 0.0
        %1759 = vmatprep.subr.mxu0 0.0
        %1760 = vmatpush1.msra.mxu0 0.0
        %1761 = vmatprep.subr.mxu0 0.0
        %1762 = vmatpush1.msra.mxu0 0.0
        %1763 = vmatprep.subr.mxu0 0.0
        %1764 = vmatpush1.msra.mxu0 0.0
        %1765 = vmatprep.subr.mxu0 0.0
        %1766 = vmatpush1.msra.mxu0 0.0
        %1767 = vmatprep.subr.mxu0 0.0
        %1768 = vmatpush1.msra.mxu0 %v1732
        %1769 = vmatprep.subr.mxu0 0.0
        %1770 = vmatpush1.msra.mxu0 %v1731
        %1771 = vmatprep.subr.mxu0 0.0
        %1772 = vmatpush1.msra.mxu0 %v1730
        %1773 = vmatprep.subr.mxu0 0.0
        %1774 = vmatpush1.msra.mxu0 %v1729
        %1775 = vmatprep.subr.mxu0 0.0
        %1776 = vmatpush2.msra.mxu0 0.0
        %1777 = vmatprep.subr.mxu0 0.0
        %1778 = vmatpush2.msra.mxu0 0.0
        %1779 = vmatprep.subr.mxu0 0.0
        %1780 = vmatpush2.msra.mxu0 0.0
        %1781 = vmatprep.subr.mxu0 0.0
        %1782 = vmatpush2.msra.mxu0 0.0
        %1783 = vmatprep.subr.mxu0 0.0
        %1784 = vmatpush2.msra.mxu0 0.0
        %1785 = vmatprep.subr.mxu0 0.0
        %1786 = vmatpush2.msra.mxu0 0.0
        %1787 = vmatprep.subr.mxu0 0.0
        %1788 = vmatpush2.msra.mxu0 0.0
        %1789 = vmatprep.subr.mxu0 0.0
        %1790 = vmatpush2.msra.mxu0 0.0
        %1791 = vmatprep.subr.mxu0 0.0
        %1792 = vmatpush2.msra.mxu0 0.0
        %1793 = vmatprep.subr.mxu0 0.0
        %1794 = vmatpush2.msra.mxu0 0.0
        %1795 = vmatprep.subr.mxu0 0.0
        %1796 = vmatpush2.msra.mxu0 0.0
        %1797 = vmatprep.subr.mxu0 0.0
        %1798 = vmatpush2.msra.mxu0 0.0
        %1799 = vmatprep.subr.mxu0 0.0
        %1800 = vmatpush2.msra.mxu0 0.0
        %1801 = vmatprep.subr.mxu0 0.0
        %1802 = vmatpush2.msra.mxu0 0.0
        %1803 = vmatprep.subr.mxu0 0.0
        %1804 = vmatpush2.msra.mxu0 0.0
        %1805 = vmatprep.subr.mxu0 0.0
        %1806 = vmatpush2.msra.mxu0 0.0
        %1807 = vmatprep.mubr.f32.mxu0 0.0
        %1808 = vmatmul.mubr.f32.gmra.mxu0 %v1741
        %v1809 = vpop.f32.mrf.mxu0
        %v1810 = vadd.f32 %v1738, %v1809
        %v1811 = vpop.f32.mrf.mxu0
        %1812 = vdwg.mxu0
        %v1813 = vmax.f32 %v1810, 0.0
        %v1814 = vld [vmem:[%s6] sm:$0xff]
        %v1815 = vld [vmem:[%s6 + $0x8] sm:$0xff]
        %v1816 = vld [vmem:[%s6 + $0x10] sm:$0xff]
        %v1817 = vld [vmem:[%s6 + $0x18] sm:$0xff]
        %v1818 = vld [vmem:[%s6 + $0x20] sm:$0xff]
        %v1819 = vld [vmem:[%s6 + $0x28] sm:$0xff]
        %v1820 = vld [vmem:[%s6 + $0x30] sm:$0xff]
        %v1821 = vld [vmem:[%s6 + $0x38] sm:$0xff]
        %v1822 = vld [vmem:[%s7] sm:$0x1]
        %v1824 = vlaneseq
        %v1825 = vshrl.u32 %v1824, 7
        %v1826 = vsub.s32 0, %v1825
        %v1827 = vrot.slane %v1822, %v1826
        %vm1829 = vcmask 523264
        %v1831 = vsel %vm1829, %v1813, 0
        %1833 = vmatprep.subr.mxu0 0.0
        %1834 = vmatpush1.msra.mxu0 0.0
        %1835 = vmatprep.subr.mxu0 0.0
        %1836 = vmatpush1.msra.mxu0 0.0
        %1837 = vmatprep.subr.mxu0 0.0
        %1838 = vmatpush1.msra.mxu0 0.0
        %1839 = vmatprep.subr.mxu0 0.0
        %1840 = vmatpush1.msra.mxu0 0.0
        %1841 = vmatprep.subr.mxu0 0.0
        %1842 = vmatpush1.msra.mxu0 0.0
        %1843 = vmatprep.subr.mxu0 0.0
        %1844 = vmatpush1.msra.mxu0 0.0
        %1845 = vmatprep.subr.mxu0 0.0
        %1846 = vmatpush1.msra.mxu0 0.0
        %1847 = vmatprep.subr.mxu0 0.0
        %1848 = vmatpush1.msra.mxu0 0.0
        %1849 = vmatprep.subr.mxu0 0.0
        %1850 = vmatpush1.msra.mxu0 %v1821
        %1851 = vmatprep.subr.mxu0 0.0
        %1852 = vmatpush1.msra.mxu0 %v1820
        %1853 = vmatprep.subr.mxu0 0.0
        %1854 = vmatpush1.msra.mxu0 %v1819
        %1855 = vmatprep.subr.mxu0 0.0
        %1856 = vmatpush1.msra.mxu0 %v1818
        %1857 = vmatprep.subr.mxu0 0.0
        %1858 = vmatpush1.msra.mxu0 %v1817
        %1859 = vmatprep.subr.mxu0 0.0
        %1860 = vmatpush1.msra.mxu0 %v1816
        %1861 = vmatprep.subr.mxu0 0.0
        %1862 = vmatpush1.msra.mxu0 %v1815
        %1863 = vmatprep.subr.mxu0 0.0
        %1864 = vmatpush1.msra.mxu0 %v1814
        %1865 = vmatprep.subr.mxu0 0.0
        %1866 = vmatpush2.msra.mxu0 0.0
        %1867 = vmatprep.subr.mxu0 0.0
        %1868 = vmatpush2.msra.mxu0 0.0
        %1869 = vmatprep.subr.mxu0 0.0
        %1870 = vmatpush2.msra.mxu0 0.0
        %1871 = vmatprep.subr.mxu0 0.0
        %1872 = vmatpush2.msra.mxu0 0.0
        %1873 = vmatprep.subr.mxu0 0.0
        %1874 = vmatpush2.msra.mxu0 0.0
        %1875 = vmatprep.subr.mxu0 0.0
        %1876 = vmatpush2.msra.mxu0 0.0
        %1877 = vmatprep.subr.mxu0 0.0
        %1878 = vmatpush2.msra.mxu0 0.0
        %1879 = vmatprep.subr.mxu0 0.0
        %1880 = vmatpush2.msra.mxu0 0.0
        %1881 = vmatprep.subr.mxu0 0.0
        %1882 = vmatpush2.msra.mxu0 0.0
        %1883 = vmatprep.subr.mxu0 0.0
        %1884 = vmatpush2.msra.mxu0 0.0
        %1885 = vmatprep.subr.mxu0 0.0
        %1886 = vmatpush2.msra.mxu0 0.0
        %1887 = vmatprep.subr.mxu0 0.0
        %1888 = vmatpush2.msra.mxu0 0.0
        %1889 = vmatprep.subr.mxu0 0.0
        %1890 = vmatpush2.msra.mxu0 0.0
        %1891 = vmatprep.subr.mxu0 0.0
        %1892 = vmatpush2.msra.mxu0 0.0
        %1893 = vmatprep.subr.mxu0 0.0
        %1894 = vmatpush2.msra.mxu0 0.0
        %1895 = vmatprep.subr.mxu0 0.0
        %1896 = vmatpush2.msra.mxu0 0.0
        %1897 = vmatprep.mubr.f32.mxu0 0.0
        %1898 = vmatmul.mubr.f32.gmra.mxu0 %v1831
        %v1899 = vpop.f32.mrf.mxu0
        %v1900 = vadd.f32 %v1827, %v1899
        %v1901 = vpop.f32.mrf.mxu0
        %1902 = vdwg.mxu0
        %v1903 = vadd.f32 %v1728, %v1900
        %1904 = vst.msk [vmem:[%s320] sm:$0xff] %vm326, %v1903
        %s1905 = sand.u32 %s206, 1
        %s1906 = scalar_lea.sflag [#allocation4], %s1905
        %s1907 = sand.u32 %s206, 1
        %s1908 = smul.addr %s1907, 8
        %s1909 = scalar_lea.vmem [#allocation5], %s1908
        // Predicated region
        $region57: #{tpu_custom_call.1} parent=51 // pred_check
          %p1910 = pneg %p216
        $region58: #{tpu_custom_call.1} parent=51 // pred_check_branch
          %1912 = sbr.rel (%p1910) target = $region60
        $region59: #{tpu_custom_call.1} parent=51 // pred_region
          %s1914 = ssub.s32 128, 128
          %1915 = vsyncadd %s1906, %s1914
          %s1916 = smul.addr %s25, 128
          %s1917 = scalar_lea.hbm %s8, %s1916
          %s1919 = sshll.u32 %s1909, 4
          %s1920 = int_to_ptr.vmem [resolvable:$true] %s1919
          %1922 = dma.vmem_to_hbm [thread:$0]  %s1920, 128, %s1917, %s1906
        $region60: #{tpu_custom_call.1} parent=51 // pred_fallthru
          _
      $region52: #{tpu_custom_call.1} parent=5 // pred_fallthru
        _
      %p1923 = scmp.le.s32.totalorder 2, %s20
      // Predicated region
      $region61: #{tpu_custom_call.1} parent=5 // pred_check
        %p1924 = pneg %p1923
      $region62: #{tpu_custom_call.1} parent=5 // pred_check_branch
        %1926 = sbr.rel (%p1924) target = $region64
      $region63: #{tpu_custom_call.1} parent=5 // pred_region
        %s1927 = ssub.s32 %s20, 2
        // Predicated region
        $region65: #{tpu_custom_call.1} parent=63 // pred_check
          %p1928 = pneg %p222
        $region66: #{tpu_custom_call.1} parent=63 // pred_check_branch
          %1930 = sbr.rel (%p1928) target = $region68
        $region67: #{tpu_custom_call.1} parent=63 // pred_region
          %s1931 = sand.u32 %s207, 1
          %s1932 = scalar_lea.sflag [#allocation4], %s1931
          %s1933 = sand.u32 %s207, 1
          %s1934 = smul.addr %s1933, 8
          %s1935 = scalar_lea.vmem [#allocation5], %s1934
          %1936 = dma.done %s1932, 128
        $region68: #{tpu_custom_call.1} parent=63 // pred_fallthru
          _
      $region64: #{tpu_custom_call.1} parent=5 // pred_fallthru
        _
    $region6: #{tpu_custom_call.1} parent=1 // loop_footer
      %s24 = sadd.s32 1, %s20
    $region7: #{tpu_custom_call.1} parent=1 // loop_footer_branch
      %19 = sbr.rel target = $region3
    $region8: #{tpu_custom_call.1} parent=1 // loop_exit
      _
    %1937 = vsyncpa [#allocation3], 1
    %s1938 = scalar_lea.sflag [#allocation3], 1
    %1939 = vsyncpa %s1938, 1
    %1940 = vsyncpa [#allocation4], 1
    %s1941 = scalar_lea.sflag [#allocation4], 1
    %1942 = vsyncpa %s1941, 1

</llo_original>
